<compile_context>
chip_gen: v6e
topology: v6e:2x2x1
jax: 0.10.0
libtpu: 0.0.40
codegen_flags: <defaults>
</compile_context>

<pallas_src>
import jax
import jax.numpy as jnp
from jax import lax
from jax.experimental import pallas as pl
from jax.experimental.pallas import tpu as pltpu

_LANES = 128


def _cosine_activation_kernel(tau_ref, w_ref, mask_ref, out_ref):
    # tau_ref:  (PACK+1, TM) f32 — row p holds logical elements m with
    #                              m % PACK == p; last row is all ones
    #                              (bias row for the folded bias).
    # w_ref:    (PACK+1, L)  f32 — block-diagonal weights; last row = biases.
    # mask_ref: (1, L)       f32 — 1.0 -> cos column, 0.0 -> linear column.
    # out_ref:  (TM, L)      out dtype (bf16 by default).
    lin = lax.dot_general(
        tau_ref[...], w_ref[...],
        dimension_numbers=(((0,), (0,)), ((), ())),   # contract sublane dim
        preferred_element_type=jnp.float32)           # -> (TM, L)
    is_cos = mask_ref[...] > 0.5                      # (1, L), broadcasts
    out_ref[...] = jnp.where(is_cos, jnp.cos(lin), lin).astype(out_ref.dtype)


def _round_up(x, m):
    return ((x + m - 1) // m) * m


def cosine_activation(tau, w, b, w0, b0, *, tm_max=8192,
                      out_dtype=jnp.bfloat16):
    """tau: (B, S); w: (1, K-1); b: (K-1,); w0: (1, 1); b0: (1,) -> (B, S, K)."""
    B, S = tau.shape
    assert w.shape[0] == 1 and w0.shape == (1, 1), "in_features must be 1"
    K = w.shape[1] + 1
    M = B * S

    # Lane packing: K_pad is a power-of-two divisor of 128 (or a multiple of
    # 128 when K > 128) so every output block is a full 128-lane store.
    if K <= _LANES:
        k_pad = max(1, pl.next_power_of_2(K))
        pack = _LANES // k_pad
        L = _LANES
    else:
        k_pad = _round_up(K, _LANES)
        pack = 1
        L = k_pad
    packp = pack + 1                                   # + all-ones bias row

    rows = pl.cdiv(M, pack)                            # packed rows needed
    # Tile rows: multiple of 128 (lane dim of the tau block / sublane dim of
    # the output block).  Cap at ~half the rows for larger problems so the
    # "parallel" grid axis has >= 2 tiles (both v7x TensorCores busy).
    tm_cap = max(_LANES, (tm_max // _LANES) * _LANES)
    if rows <= _LANES:
        tm = _LANES
    else:
        tm = min(tm_cap, _round_up(pl.cdiv(rows, 2), _LANES))
    n_tiles = pl.cdiv(rows, tm)
    rows_pad = n_tiles * tm
    m_pad = rows_pad * pack

    # tau -> transposed packed operand (pack+1, rows_pad): lane dim dense,
    # sublane dim pads only to 8; last row is ones (folded bias).
    tau_flat = jnp.pad(tau.reshape(-1).astype(jnp.float32), (0, m_pad - M))
    tau_t = tau_flat.reshape(rows_pad, pack).T          # (pack, rows_pad)
    tau_op = jnp.concatenate(
        [tau_t, jnp.ones((1, rows_pad), jnp.float32)], axis=0)

    # Per-feature weight/bias rows (periodic features then the linear one),
    # zero-padded to k_pad, laid out block-diagonally across the lanes.
    w_row = jnp.pad(
        jnp.concatenate([w.reshape(-1), w0.reshape(-1)]).astype(jnp.float32),
        (0, k_pad - K))
    b_row = jnp.pad(
        jnp.concatenate([b.reshape(-1), b0.reshape(-1)]).astype(jnp.float32),
        (0, k_pad - K))
    eye = jnp.eye(pack, dtype=jnp.float32)
    w_blk = (eye[:, :, None] * w_row[None, None, :]).reshape(pack, L)
    w_op = jnp.concatenate([w_blk, jnp.tile(b_row, pack).reshape(1, L)], 0)
    mask_k = jnp.concatenate([jnp.ones((K - 1,), jnp.float32),
                              jnp.zeros((k_pad - K + 1,), jnp.float32)])
    mask_row = jnp.tile(mask_k, pack).reshape(1, L)

    out_bytes = rows_pad * L * jnp.dtype(out_dtype).itemsize
    cost = pl.CostEstimate(
        flops=int(2 * rows_pad * packp * L),
        transcendentals=int(rows_pad * L),
        bytes_accessed=int(4 * 8 * rows_pad            # tau (sublanes pad to 8)
                           + 4 * (packp + 1) * L       # weights+bias + mask
                           + out_bytes),
    )

    out = pl.pallas_call(
        _cosine_activation_kernel,
        out_shape=jax.ShapeDtypeStruct((rows_pad, L), out_dtype),
        grid=(n_tiles,),
        in_specs=[
            pl.BlockSpec((packp, tm), lambda i: (0, i)),   # tau (transposed)
            pl.BlockSpec((packp, L), lambda i: (0, 0)),    # weights + bias row
            pl.BlockSpec((1, L), lambda i: (0, 0)),        # cos/linear mask
        ],
        out_specs=pl.BlockSpec((tm, L), lambda i: (i, 0)),
        compiler_params=pltpu.CompilerParams(
            dimension_semantics=("parallel",),
            vmem_limit_bytes=32 * 1024 * 1024),
        cost_estimate=cost,
    )(tau_op, w_op, mask_row)

    # Undo lane packing (row-major reshape), drop row/feature padding.
    return out.reshape(rows_pad * pack, k_pad)[:M, :K].reshape(B, S, K)


def cosine_activation_ref(tau, w, b, w0, b0):
    tau_u = tau[..., None].astype(jnp.float32)
    v1 = jnp.cos(jnp.matmul(tau_u, w) + b)
    v2 = jnp.matmul(tau_u, w0) + b0
    return jnp.concatenate([v1, v2], axis=-1)


if __name__ == "__main__":
    in_features = 1
    out_features = 32

    key = jax.random.PRNGKey(0)
    k_tau, k_w, k_b, k_w0, k_b0, k_tau2 = jax.random.split(key, 6)

    w = jax.random.normal(k_w, (in_features, out_features - 1), jnp.float32)
    b = jax.random.normal(k_b, (out_features - 1,), jnp.float32)
    w0 = jax.random.normal(k_w0, (in_features, 1), jnp.float32)
    b0 = jax.random.normal(k_b0, (1,), jnp.float32)

    # Small shape implied by the module: batch=2, seq=8, hidden=out_features.
    B, S = 2, 8
    tau = jax.random.normal(k_tau, (B, S), dtype=jnp.float32)
    ref = cosine_activation_ref(tau, w, b, w0, b0)

    # Default bf16-output path (halves the dominant HBM store stream).
    out = jax.block_until_ready(cosine_activation(tau, w, b, w0, b0))
    assert out.shape == (B, S, out_features), out.shape
    assert out.dtype == jnp.bfloat16, out.dtype
    assert jnp.allclose(out.astype(jnp.float32), ref, atol=5e-2, rtol=2e-2), \
        float(jnp.max(jnp.abs(out.astype(jnp.float32) - ref)))

    # f32-output path: tight agreement with the reference math.
    out_f32 = jax.block_until_ready(
        cosine_activation(tau, w, b, w0, b0, out_dtype=jnp.float32))
    assert jnp.allclose(out_f32, ref, atol=2e-5, rtol=2e-5), \
        float(jnp.max(jnp.abs(out_f32 - ref)))

    # Multi-tile + row-padding path (rows > 128 -> 2 grid tiles).
    B2, S2 = 3, 200
    tau2 = jax.random.normal(k_tau2, (B2, S2), dtype=jnp.float32)
    out2 = jax.block_until_ready(cosine_activation(tau2, w, b, w0, b0))
    ref2 = cosine_activation_ref(tau2, w, b, w0, b0)
    assert out2.shape == (B2, S2, out_features), out2.shape
    assert jnp.allclose(out2.astype(jnp.float32), ref2, atol=5e-2, rtol=2e-2), \
        float(jnp.max(jnp.abs(out2.astype(jnp.float32) - ref2)))

    # Feature-padding path: out_features that does not divide 128 (K=5 -> 8).
    K3 = 5
    w3 = jax.random.normal(k_w, (in_features, K3 - 1), jnp.float32)
    b3 = jax.random.normal(k_b, (K3 - 1,), jnp.float32)
    out3 = jax.block_until_ready(cosine_activation(tau, w3, b3, w0, b0))
    ref3 = cosine_activation_ref(tau, w3, b3, w0, b0)
    assert out3.shape == (B, S, K3), out3.shape
    assert jnp.allclose(out3.astype(jnp.float32), ref3, atol=5e-2, rtol=2e-2), \
        float(jnp.max(jnp.abs(out3.astype(jnp.float32) - ref3)))

    print("KERNEL_OK")
</pallas_src>

<mosaic_0001>
module attributes {stable_mosaic.version = 11 : i64} {
  func.func @_cosine_activation_kernel(%arg0: i32, %arg1: memref<5x128xf32, #tpu.memory_space<vmem>>, %arg2: memref<5x128xf32, #tpu.memory_space<vmem>>, %arg3: memref<1x128xf32, #tpu.memory_space<vmem>>, %arg4: memref<128x128xbf16, #tpu.memory_space<vmem>>) attributes {dimension_semantics = [#tpu.dimension_semantics<parallel>], iteration_bounds = array<i64: 1>, scalar_prefetch = 0 : i64, scratch_operands = 0 : i64, tpu.core_type = #tpu.core_type<tc>, window_params = [{transform_indices = @transform_0, window_bounds = array<i64: 5, 128>}, {pipeline_mode = #tpu.pipeline_mode<synchronous>, transform_indices = @transform_1, window_bounds = array<i64: 5, 128>}, {pipeline_mode = #tpu.pipeline_mode<synchronous>, transform_indices = @transform_2, window_bounds = array<i64: 1, 128>}, {transform_indices = @transform_3, window_bounds = array<i64: 128, 128>}]} {
    %c0 = arith.constant 0 : index
    %c0_0 = arith.constant 0 : index
    %0 = vector.load %arg1[%c0, %c0_0] : memref<5x128xf32, #tpu.memory_space<vmem>>, vector<5x128xf32>
    %c0_1 = arith.constant 0 : index
    %c0_2 = arith.constant 0 : index
    %1 = vector.load %arg2[%c0_1, %c0_2] : memref<5x128xf32, #tpu.memory_space<vmem>>, vector<5x128xf32>
    %cst = arith.constant dense<0.000000e+00> : vector<128x128xf32>
    %2 = tpu.matmul %0, %1, %cst {dimension_numbers = #tpu.dot_dimension_numbers<[0], [0], [1], [1], [0, 1, 1, 1], [], []>} : vector<5x128xf32>, vector<5x128xf32>, vector<128x128xf32> -> vector<128x128xf32>
    %c0_3 = arith.constant 0 : index
    %c0_4 = arith.constant 0 : index
    %3 = vector.load %arg3[%c0_3, %c0_4] : memref<1x128xf32, #tpu.memory_space<vmem>>, vector<1x128xf32>
    %cst_5 = arith.constant 5.000000e-01 : f32
    %4 = vector.broadcast %cst_5 : f32 to vector<1x128xf32>
    %5 = arith.cmpf ogt, %3, %4 : vector<1x128xf32>
    %6 = math.cos %2 : vector<128x128xf32>
    %7 = vector.shape_cast %5 : vector<1x128xi1> to vector<1x128xi1>
    %8 = vector.broadcast %7 : vector<1x128xi1> to vector<128x128xi1>
    %9 = arith.select %8, %6, %2 : vector<128x128xi1>, vector<128x128xf32>
    %10 = arith.truncf %9 : vector<128x128xf32> to vector<128x128xbf16>
    %c0_6 = arith.constant 0 : index
    %c0_7 = arith.constant 0 : index
    %11 = vector.load %arg4[%c0_6, %c0_7] : memref<128x128xbf16, #tpu.memory_space<vmem>>, vector<128x128xbf16>
    tpu.vector_store %arg4[%c0_6, %c0_7], %10 {strides = array<i32>} : memref<128x128xbf16, #tpu.memory_space<vmem>>, vector<128x128xbf16>,
    return
  }
  func.func @transform_0(%arg0: i32) -> (i32, i32) {
    %c0_i32 = arith.constant 0 : i32
    %c0_i32_0 = arith.constant 0 : i32
    return %c0_i32, %arg0 : i32, i32
  }
  func.func @transform_1(%arg0: i32) -> (i32, i32) {
    %c0_i32 = arith.constant 0 : i32
    %c0_i32_0 = arith.constant 0 : i32
    %c0_i32_1 = arith.constant 0 : i32
    return %c0_i32, %c0_i32_0 : i32, i32
  }
  func.func @transform_2(%arg0: i32) -> (i32, i32) {
    %c0_i32 = arith.constant 0 : i32
    %c0_i32_0 = arith.constant 0 : i32
    %c0_i32_1 = arith.constant 0 : i32
    return %c0_i32, %c0_i32_0 : i32, i32
  }
  func.func @transform_3(%arg0: i32) -> (i32, i32) {
    %c0_i32 = arith.constant 0 : i32
    %c0_i32_0 = arith.constant 0 : i32
    return %arg0, %c0_i32 : i32, i32
  }
}

</mosaic_0001>

<llo_original>
// kernel: tpu_custom_call.1
$region0: #{tpu_custom_call.1}
  #allocation0 [shape = 'u32[]', space=smem, size = 0x4, offset = 0x4, fixed_abs, tag = 'smem constant byte address 0x4 - core index']
  #allocation1 [shape = 'u32[144,128]{1,0:T(1,128)}', space=vmem, size = 0x12000, scoped, tag = 'internal scratch']
  %s0 = inlined_call_operand.hbm [shape: f32[5,128], index: 0, kind: input, shape index: {}]
  %s1 = inlined_call_operand.hbm [shape: f32[5,128], index: 1, kind: input, shape index: {}]
  %s2 = inlined_call_operand.vmem [shape: f32[1,128], index: 2, kind: input, shape index: {}]
  %s3 = inlined_call_operand.hbm [shape: bf16[128,128], index: 3, kind: output, shape index: {}]
  %s4 = sld [smem:[#allocation0]]
  $region30: #{tpu_custom_call.1} parent=0
    _
  %s6 = ssub.s32 1, %s4
  %s7 = scalar_select 0, %s6, %s4
  $region1: #{tpu_custom_call.1} parent=0
    #allocation2 [shape = 'u8[4096]{0}', space=vmem, size = 0x1000, scoped, tag = 'input window, operand 0, single buffered']
    #allocation3 [shape = 's32[1]{0}', space=sflag, size = 0x4, scoped, tag = 'scoped memory for tpu_custom_call.1']
    #allocation4 [shape = 's32[1]{0}', space=sflag, size = 0x4, scoped, tag = 'scoped memory for tpu_custom_call.1']
    #allocation5 [shape = 'u8[4096]{0}', space=vmem, size = 0x1000, scoped, tag = 'input window, operand 1, single buffered']
    #allocation6 [shape = 's32[1]{0}', space=sflag, size = 0x4, scoped, tag = 'scoped memory for tpu_custom_call.1']
    #allocation7 [shape = 'u8[32768]{0}', space=vmem, size = 0x8000, scoped, tag = 'output window, operand 0, single buffered']
    %8 = vsyncpa [#allocation3], 0
    %9 = vsyncpa [#allocation6], 0
    %10 = vsyncpa [#allocation4], 0
    // Predicated region
    $region2: #{tpu_custom_call.1} parent=1 // pred_check
      _
    $region3: #{tpu_custom_call.1} parent=1 // pred_check_branch
      %12 = sbr.rel (0) target = $region5
    $region4: #{tpu_custom_call.1} parent=1 // pred_region
      %s14 = ssub.s32 128, 128
      %15 = vsyncadd [#allocation3], %s14
      %s17 = sshll.u32 [#allocation2], 4
      %s18 = int_to_ptr.vmem [resolvable:$true] %s17
      %20 = dma.hbm_to_vmem [thread:$0]  %s0, 128, %s18, [#allocation3]
    $region5: #{tpu_custom_call.1} parent=1 // pred_fallthru
      _
    // Predicated region
    $region6: #{tpu_custom_call.1} parent=1 // pred_check
      _
    $region7: #{tpu_custom_call.1} parent=1 // pred_check_branch
      %22 = sbr.rel (0) target = $region9
    $region8: #{tpu_custom_call.1} parent=1 // pred_region
      %s24 = ssub.s32 128, 128
      %25 = vsyncadd [#allocation6], %s24
      %s27 = sshll.u32 [#allocation5], 4
      %s28 = int_to_ptr.vmem [resolvable:$true] %s27
      %30 = dma.hbm_to_vmem [thread:$0]  %s1, 128, %s28, [#allocation6]
    $region9: #{tpu_custom_call.1} parent=1 // pred_fallthru
      _
    // Predicated region
    $region10: #{tpu_custom_call.1} parent=1 // pred_check
      _
    $region11: #{tpu_custom_call.1} parent=1 // pred_check_branch
      %32 = sbr.rel (0) target = $region13
    $region12: #{tpu_custom_call.1} parent=1 // pred_region
      _
    $region13: #{tpu_custom_call.1} parent=1 // pred_fallthru
      _
    // Predicated region
    $region14: #{tpu_custom_call.1} parent=1 // pred_check
      _
    $region15: #{tpu_custom_call.1} parent=1 // pred_check_branch
      %34 = sbr.rel (0) target = $region17
    $region16: #{tpu_custom_call.1} parent=1 // pred_region
      %35 = dma.done [#allocation3], 128
    $region17: #{tpu_custom_call.1} parent=1 // pred_fallthru
      _
    // Predicated region
    $region18: #{tpu_custom_call.1} parent=1 // pred_check
      _
    $region19: #{tpu_custom_call.1} parent=1 // pred_check_branch
      %37 = sbr.rel (0) target = $region21
    $region20: #{tpu_custom_call.1} parent=1 // pred_region
      %38 = dma.done [#allocation6], 128
    $region21: #{tpu_custom_call.1} parent=1 // pred_fallthru
      _
    %v39 = vld [vmem:[#allocation2] sm:$0x1f]
    %v40 = vld [vmem:[#allocation5] sm:$0x1f]
    %41 = vxpose.xlu0.b32.start [1/16] %v39, 128
    %42 = vxpose.xlu0.b32.cont [2/16] 0.0, 128
    %43 = vxpose.xlu0.b32.cont [3/16] 0.0, 128
    %44 = vxpose.xlu0.b32.cont [4/16] 0.0, 128
    %45 = vxpose.xlu0.b32.cont [5/16] 0.0, 128
    %46 = vxpose.xlu0.b32.cont [6/16] 0.0, 128
    %47 = vxpose.xlu0.b32.cont [7/16] 0.0, 128
    %48 = vxpose.xlu0.b32.cont [8/16] 0.0, 128
    %49 = vxpose.xlu0.b32.cont [9/16] 0.0, 128
    %50 = vxpose.xlu0.b32.cont [10/16] 0.0, 128
    %51 = vxpose.xlu0.b32.cont [11/16] 0.0, 128
    %52 = vxpose.xlu0.b32.cont [12/16] 0.0, 128
    %53 = vxpose.xlu0.b32.cont [13/16] 0.0, 128
    %54 = vxpose.xlu0.b32.cont [14/16] 0.0, 128
    %55 = vxpose.xlu0.b32.cont [15/16] 0.0, 128
    %56 = vxpose.xlu0.b32.end [16/16] 0.0, 128
    %v57 = vpop.trf.xlu0
    %v58 = vpop.trf.xlu0
    %v59 = vpop.trf.xlu0
    %v60 = vpop.trf.xlu0
    %v61 = vpop.trf.xlu0
    %v62 = vpop.trf.xlu0
    %v63 = vpop.trf.xlu0
    %v64 = vpop.trf.xlu0
    %v65 = vpop.trf.xlu0
    %v66 = vpop.trf.xlu0
    %v67 = vpop.trf.xlu0
    %v68 = vpop.trf.xlu0
    %v69 = vpop.trf.xlu0
    %v70 = vpop.trf.xlu0
    %v71 = vpop.trf.xlu0
    %v72 = vpop.trf.xlu0
    %vm73 = vcmask 39936
    %v75 = vsel %vm73, %v57, 0
    %v78 = vsel %vm73, %v58, 0
    %v81 = vsel %vm73, %v59, 0
    %v84 = vsel %vm73, %v60, 0
    %v87 = vsel %vm73, %v61, 0
    %v90 = vsel %vm73, %v62, 0
    %v93 = vsel %vm73, %v63, 0
    %v96 = vsel %vm73, %v64, 0
    %v99 = vsel %vm73, %v65, 0
    %v102 = vsel %vm73, %v66, 0
    %v105 = vsel %vm73, %v67, 0
    %v108 = vsel %vm73, %v68, 0
    %v111 = vsel %vm73, %v69, 0
    %v114 = vsel %vm73, %v70, 0
    %v117 = vsel %vm73, %v71, 0
    %v120 = vsel %vm73, %v72, 0
    %vm122 = vcmask 1044480
    %v124 = vsel %vm122, %v40, 0
    %126 = vmatprep.subr.mxu0 0.0
    %127 = vmatpush1.msra.mxu0 0.0
    %128 = vmatprep.subr.mxu0 0.0
    %129 = vmatpush1.msra.mxu0 0.0
    %130 = vmatprep.subr.mxu0 0.0
    %131 = vmatpush1.msra.mxu0 0.0
    %132 = vmatprep.subr.mxu0 0.0
    %133 = vmatpush1.msra.mxu0 0.0
    %134 = vmatprep.subr.mxu0 0.0
    %135 = vmatpush1.msra.mxu0 0.0
    %136 = vmatprep.subr.mxu0 0.0
    %137 = vmatpush1.msra.mxu0 0.0
    %138 = vmatprep.subr.mxu0 0.0
    %139 = vmatpush1.msra.mxu0 0.0
    %140 = vmatprep.subr.mxu0 0.0
    %141 = vmatpush1.msra.mxu0 0.0
    %142 = vmatprep.subr.mxu0 0.0
    %143 = vmatpush1.msra.mxu0 0.0
    %144 = vmatprep.subr.mxu0 0.0
    %145 = vmatpush1.msra.mxu0 0.0
    %146 = vmatprep.subr.mxu0 0.0
    %147 = vmatpush1.msra.mxu0 0.0
    %148 = vmatprep.subr.mxu0 0.0
    %149 = vmatpush1.msra.mxu0 0.0
    %150 = vmatprep.subr.mxu0 0.0
    %151 = vmatpush1.msra.mxu0 0.0
    %152 = vmatprep.subr.mxu0 0.0
    %153 = vmatpush1.msra.mxu0 0.0
    %154 = vmatprep.subr.mxu0 0.0
    %155 = vmatpush1.msra.mxu0 0.0
    %156 = vmatprep.subr.mxu0 0.0
    %157 = vmatpush1.msra.mxu0 %v124
    %158 = vmatprep.subr.mxu0 0.0
    %159 = vmatpush2.msra.mxu0 0.0
    %160 = vmatprep.subr.mxu0 0.0
    %161 = vmatpush2.msra.mxu0 0.0
    %162 = vmatprep.subr.mxu0 0.0
    %163 = vmatpush2.msra.mxu0 0.0
    %164 = vmatprep.subr.mxu0 0.0
    %165 = vmatpush2.msra.mxu0 0.0
    %166 = vmatprep.subr.mxu0 0.0
    %167 = vmatpush2.msra.mxu0 0.0
    %168 = vmatprep.subr.mxu0 0.0
    %169 = vmatpush2.msra.mxu0 0.0
    %170 = vmatprep.subr.mxu0 0.0
    %171 = vmatpush2.msra.mxu0 0.0
    %172 = vmatprep.subr.mxu0 0.0
    %173 = vmatpush2.msra.mxu0 0.0
    %174 = vmatprep.subr.mxu0 0.0
    %175 = vmatpush2.msra.mxu0 0.0
    %176 = vmatprep.subr.mxu0 0.0
    %177 = vmatpush2.msra.mxu0 0.0
    %178 = vmatprep.subr.mxu0 0.0
    %179 = vmatpush2.msra.mxu0 0.0
    %180 = vmatprep.subr.mxu0 0.0
    %181 = vmatpush2.msra.mxu0 0.0
    %182 = vmatprep.subr.mxu0 0.0
    %183 = vmatpush2.msra.mxu0 0.0
    %184 = vmatprep.subr.mxu0 0.0
    %185 = vmatpush2.msra.mxu0 0.0
    %186 = vmatprep.subr.mxu0 0.0
    %187 = vmatpush2.msra.mxu0 0.0
    %188 = vmatprep.subr.mxu0 0.0
    %189 = vmatpush2.msra.mxu0 0.0
    %190 = vmatprep.mubr.f32.mxu0 0.0
    %191 = vmatmul.mubr.f32.gmra.mxu0 %v75
    %v192 = vpop.f32.mrf.mxu0
    %v193 = vadd.f32 0.0, %v192
    %v194 = vpop.f32.mrf.mxu0
    %195 = vmatprep.mubr.f32.mxu0 0.0
    %196 = vmatmul.mubr.f32.gmra.mxu0 %v78
    %v197 = vpop.f32.mrf.mxu0
    %v198 = vadd.f32 0.0, %v197
    %v199 = vpop.f32.mrf.mxu0
    %200 = vmatprep.mubr.f32.mxu0 0.0
    %201 = vmatmul.mubr.f32.gmra.mxu0 %v81
    %v202 = vpop.f32.mrf.mxu0
    %v203 = vadd.f32 0.0, %v202
    %v204 = vpop.f32.mrf.mxu0
    %205 = vmatprep.mubr.f32.mxu0 0.0
    %206 = vmatmul.mubr.f32.gmra.mxu0 %v84
    %v207 = vpop.f32.mrf.mxu0
    %v208 = vadd.f32 0.0, %v207
    %v209 = vpop.f32.mrf.mxu0
    %210 = vmatprep.mubr.f32.mxu0 0.0
    %211 = vmatmul.mubr.f32.gmra.mxu0 %v87
    %v212 = vpop.f32.mrf.mxu0
    %v213 = vadd.f32 0.0, %v212
    %v214 = vpop.f32.mrf.mxu0
    %215 = vmatprep.mubr.f32.mxu0 0.0
    %216 = vmatmul.mubr.f32.gmra.mxu0 %v90
    %v217 = vpop.f32.mrf.mxu0
    %v218 = vadd.f32 0.0, %v217
    %v219 = vpop.f32.mrf.mxu0
    %220 = vmatprep.mubr.f32.mxu0 0.0
    %221 = vmatmul.mubr.f32.gmra.mxu0 %v93
    %v222 = vpop.f32.mrf.mxu0
    %v223 = vadd.f32 0.0, %v222
    %v224 = vpop.f32.mrf.mxu0
    %225 = vmatprep.mubr.f32.mxu0 0.0
    %226 = vmatmul.mubr.f32.gmra.mxu0 %v96
    %v227 = vpop.f32.mrf.mxu0
    %v228 = vadd.f32 0.0, %v227
    %v229 = vpop.f32.mrf.mxu0
    %230 = vmatprep.mubr.f32.mxu0 0.0
    %231 = vmatmul.mubr.f32.gmra.mxu0 %v99
    %v232 = vpop.f32.mrf.mxu0
    %v233 = vadd.f32 0.0, %v232
    %v234 = vpop.f32.mrf.mxu0
    %235 = vmatprep.mubr.f32.mxu0 0.0
    %236 = vmatmul.mubr.f32.gmra.mxu0 %v102
    %v237 = vpop.f32.mrf.mxu0
    %v238 = vadd.f32 0.0, %v237
    %v239 = vpop.f32.mrf.mxu0
    %240 = vmatprep.mubr.f32.mxu0 0.0
    %241 = vmatmul.mubr.f32.gmra.mxu0 %v105
    %v242 = vpop.f32.mrf.mxu0
    %v243 = vadd.f32 0.0, %v242
    %v244 = vpop.f32.mrf.mxu0
    %245 = vmatprep.mubr.f32.mxu0 0.0
    %246 = vmatmul.mubr.f32.gmra.mxu0 %v108
    %v247 = vpop.f32.mrf.mxu0
    %v248 = vadd.f32 0.0, %v247
    %v249 = vpop.f32.mrf.mxu0
    %250 = vmatprep.mubr.f32.mxu0 0.0
    %251 = vmatmul.mubr.f32.gmra.mxu0 %v111
    %v252 = vpop.f32.mrf.mxu0
    %v253 = vadd.f32 0.0, %v252
    %v254 = vpop.f32.mrf.mxu0
    %255 = vmatprep.mubr.f32.mxu0 0.0
    %256 = vmatmul.mubr.f32.gmra.mxu0 %v114
    %v257 = vpop.f32.mrf.mxu0
    %v258 = vadd.f32 0.0, %v257
    %v259 = vpop.f32.mrf.mxu0
    %260 = vmatprep.mubr.f32.mxu0 0.0
    %261 = vmatmul.mubr.f32.gmra.mxu0 %v117
    %v262 = vpop.f32.mrf.mxu0
    %v263 = vadd.f32 0.0, %v262
    %v264 = vpop.f32.mrf.mxu0
    %265 = vmatprep.mubr.f32.mxu0 0.0
    %266 = vmatmul.mubr.f32.gmra.mxu0 %v120
    %v267 = vpop.f32.mrf.mxu0
    %v268 = vadd.f32 0.0, %v267
    %v269 = vpop.f32.mrf.mxu0
    %270 = vdwg.mxu0
    %v271 = vld [vmem:[%s2] sm:$0x1]
    %vm272 = vcmp.gt.f32.partialorder %v271, 0.5
    %v273 = vand.u32 2147483647, %v193
    %vm274 = vcmp.le.f32.partialorder %v273, 0.7853982
    %vm275 = vcmp.lt.s32.totalorder %v193, 0
    %v276 = vand.u32 %v193, 2139095040
    %v277 = vshrl.u32 %v276, 23
    %v278 = vsub.s32 %v277, 127
    %v279 = vand.u32 2147483647, %v193
    %v280 = vand.u32 %v279, 8388607
    %v281 = vor.u32 %v280, 8388608
    %v282 = vsub.s32 0, %v281
    %v283 = vadd.s32 %v278, 1
    %vm284 = vcmp.gt.s32.totalorder %v283, 0
    %v285 = vsel %vm284, %v283, 0
    %v286 = vshrl.u32 %v285, 5
    %v287 = vand.u32 %v285, 31
    %v288 = vsub.s32 32, %v287
    %v289 = vshrl.u32 683565275, %v288
    %v290 = vshll.u32 683565275, %v287
    %v291 = vshrl.u32 2475754826, %v288
    %v292 = vor.u32 %v290, %v291
    %v293 = vshll.u32 2475754826, %v287
    %v294 = vshrl.u32 2131351028, %v288
    %v295 = vor.u32 %v293, %v294
    %v296 = vshll.u32 2131351028, %v287
    %v297 = vshrl.u32 2102212464, %v288
    %v298 = vor.u32 %v296, %v297
    %v299 = vshll.u32 2102212464, %v287
    %v300 = vshrl.u32 920167782, %v288
    %v301 = vor.u32 %v299, %v300
    %v302 = vshll.u32 920167782, %v287
    %v303 = vshrl.u32 1326507024, %v288
    %v304 = vor.u32 %v302, %v303
    %vm305 = vcmp.lt.s32.totalorder %v286, 1
    %vm306 = vcmp.lt.s32.totalorder %v286, 2
    %vm307 = vcmp.lt.s32.totalorder %v286, 3
    %vm308 = vcmp.lt.s32.totalorder %v286, 4
    %v309 = vsel %vm305, %v289, %v292
    %v310 = vsel %vm308, %v298, 2102212464
    %v311 = vsel %vm307, %v295, %v310
    %v312 = vsel %vm306, %v309, %v311
    %v313 = vsel %vm305, %v292, %v295
    %v314 = vsel %vm308, %v301, 920167782
    %v315 = vsel %vm307, %v298, %v314
    %v316 = vsel %vm306, %v313, %v315
    %v317 = vsel %vm305, %v295, %v298
    %v318 = vsel %vm308, %v304, 1326507024
    %v319 = vsel %vm307, %v301, %v318
    %v320 = vsel %vm306, %v317, %v319
    %v321 = vshll.u32 %v281, 8
    %v322 = vmul.u32.u64.compose %v321, %v320
    %v323 = vextract.low.u32 %v322
    %v324 = vextract.high.u32 %v322
    %v325 = vmul.u32.u64.compose %v321, %v316
    %v326 = vextract.low.u32 %v325
    %v327 = vextract.high.u32 %v325
    %v328 = vmul.u32 %v321, %v312
    %v329 = vadd.s32 %v324, %v326
    %vm330 = vc.u32 %v324, %v326
    %v331 = vadd.s32 %v327, 1
    %v332 = vsel %vm330, %v331, %v327
    %v333 = vadd.s32 %v328, %v332
    %v334 = vadd.s32 %v333, 536870912
    %v335 = vshrl.u32 %v334, 30
    %v336 = vshll.u32 %v335, 30
    %v337 = vsub.s32 %v333, %v336
    %vm338 = vcmp.lt.s32.totalorder %v337, 0
    %v339 = vsub.s32 0, %v337
    %v340 = vsel %vm338, %v339, %v337
    %v341 = vclz %v340
    %v342 = vsub.s32 %v341, 2
    %vm343 = vcmp.gt.s32.totalorder 0, %v342
    %v344 = vsel %vm343, 0, %v342
    %v345 = vsub.s32 32, %v344
    %v346 = vshll.u32 %v337, %v344
    %v347 = vshrl.u32 %v329, %v345
    %v348 = vor.u32 %v346, %v347
    %v349 = vsub.s32 4294967266, %v344
    %v350 = vadd.s32 %v349, 127
    %v351 = vshll.u32 %v350, 23
    %v352 = vor.u32 4788187, %v351
    %v353 = vand.u32 2147483647, %v352
    %v355 = vcvt.s32.f32 %v348
    %v356 = vmul.f32 %v355, %v353
    %v357 = vxor.u32 %v356, 2147483648
    %v358 = vsel %vm275, %v357, %v356
    %v359 = vsub.s32 4, %v335
    %v360 = vsel %vm275, %v359, %v335
    %v361 = vsel %vm274, %v193, %v358
    %v362 = vsel %vm274, 0, %v360
    %v363 = vcosq.f32.pop %v361
    %v364 = vsinq.f32.pop %v361
    %vm365 = vweird.f32 %v193
    %v366 = vand.u32 %v362, 3
    %vm367 = vcmp.lt.s32.totalorder %v366, 2
    %vm368 = vcmp.eq.s32.totalorder %v366, 0
    %v369 = vxor.u32 %v364, 2147483648
    %v370 = vsel %vm368, %v363, %v369
    %vm371 = vcmp.eq.s32.totalorder %v366, 2
    %v372 = vxor.u32 %v363, 2147483648
    %v373 = vsel %vm371, %v372, %v364
    %v374 = vsel %vm367, %v370, %v373
    %v375 = vsel %vm365, nan, %v374
    %v376 = vand.u32 2147483647, %v198
    %vm377 = vcmp.le.f32.partialorder %v376, 0.7853982
    %vm378 = vcmp.lt.s32.totalorder %v198, 0
    %v379 = vand.u32 %v198, 2139095040
    %v380 = vshrl.u32 %v379, 23
    %v381 = vsub.s32 %v380, 127
    %v382 = vand.u32 2147483647, %v198
    %v383 = vand.u32 %v382, 8388607
    %v384 = vor.u32 %v383, 8388608
    %v385 = vsub.s32 0, %v384
    %v386 = vadd.s32 %v381, 1
    %vm387 = vcmp.gt.s32.totalorder %v386, 0
    %v388 = vsel %vm387, %v386, 0
    %v389 = vshrl.u32 %v388, 5
    %v390 = vand.u32 %v388, 31
    %v391 = vsub.s32 32, %v390
    %v392 = vshrl.u32 683565275, %v391
    %v393 = vshll.u32 683565275, %v390
    %v394 = vshrl.u32 2475754826, %v391
    %v395 = vor.u32 %v393, %v394
    %v396 = vshll.u32 2475754826, %v390
    %v397 = vshrl.u32 2131351028, %v391
    %v398 = vor.u32 %v396, %v397
    %v399 = vshll.u32 2131351028, %v390
    %v400 = vshrl.u32 2102212464, %v391
    %v401 = vor.u32 %v399, %v400
    %v402 = vshll.u32 2102212464, %v390
    %v403 = vshrl.u32 920167782, %v391
    %v404 = vor.u32 %v402, %v403
    %v405 = vshll.u32 920167782, %v390
    %v406 = vshrl.u32 1326507024, %v391
    %v407 = vor.u32 %v405, %v406
    %vm408 = vcmp.lt.s32.totalorder %v389, 1
    %vm409 = vcmp.lt.s32.totalorder %v389, 2
    %vm410 = vcmp.lt.s32.totalorder %v389, 3
    %vm411 = vcmp.lt.s32.totalorder %v389, 4
    %v412 = vsel %vm408, %v392, %v395
    %v413 = vsel %vm411, %v401, 2102212464
    %v414 = vsel %vm410, %v398, %v413
    %v415 = vsel %vm409, %v412, %v414
    %v416 = vsel %vm408, %v395, %v398
    %v417 = vsel %vm411, %v404, 920167782
    %v418 = vsel %vm410, %v401, %v417
    %v419 = vsel %vm409, %v416, %v418
    %v420 = vsel %vm408, %v398, %v401
    %v421 = vsel %vm411, %v407, 1326507024
    %v422 = vsel %vm410, %v404, %v421
    %v423 = vsel %vm409, %v420, %v422
    %v424 = vshll.u32 %v384, 8
    %v425 = vmul.u32.u64.compose %v424, %v423
    %v426 = vextract.low.u32 %v425
    %v427 = vextract.high.u32 %v425
    %v428 = vmul.u32.u64.compose %v424, %v419
    %v429 = vextract.low.u32 %v428
    %v430 = vextract.high.u32 %v428
    %v431 = vmul.u32 %v424, %v415
    %v432 = vadd.s32 %v427, %v429
    %vm433 = vc.u32 %v427, %v429
    %v434 = vadd.s32 %v430, 1
    %v435 = vsel %vm433, %v434, %v430
    %v436 = vadd.s32 %v431, %v435
    %v437 = vadd.s32 %v436, 536870912
    %v438 = vshrl.u32 %v437, 30
    %v439 = vshll.u32 %v438, 30
    %v440 = vsub.s32 %v436, %v439
    %vm441 = vcmp.lt.s32.totalorder %v440, 0
    %v442 = vsub.s32 0, %v440
    %v443 = vsel %vm441, %v442, %v440
    %v444 = vclz %v443
    %v445 = vsub.s32 %v444, 2
    %vm446 = vcmp.gt.s32.totalorder 0, %v445
    %v447 = vsel %vm446, 0, %v445
    %v448 = vsub.s32 32, %v447
    %v449 = vshll.u32 %v440, %v447
    %v450 = vshrl.u32 %v432, %v448
    %v451 = vor.u32 %v449, %v450
    %v452 = vsub.s32 4294967266, %v447
    %v453 = vadd.s32 %v452, 127
    %v454 = vshll.u32 %v453, 23
    %v455 = vor.u32 4788187, %v454
    %v456 = vand.u32 2147483647, %v455
    %v458 = vcvt.s32.f32 %v451
    %v459 = vmul.f32 %v458, %v456
    %v460 = vxor.u32 %v459, 2147483648
    %v461 = vsel %vm378, %v460, %v459
    %v462 = vsub.s32 4, %v438
    %v463 = vsel %vm378, %v462, %v438
    %v464 = vsel %vm377, %v198, %v461
    %v465 = vsel %vm377, 0, %v463
    %v466 = vcosq.f32.pop %v464
    %v467 = vsinq.f32.pop %v464
    %vm468 = vweird.f32 %v198
    %v469 = vand.u32 %v465, 3
    %vm470 = vcmp.lt.s32.totalorder %v469, 2
    %vm471 = vcmp.eq.s32.totalorder %v469, 0
    %v472 = vxor.u32 %v467, 2147483648
    %v473 = vsel %vm471, %v466, %v472
    %vm474 = vcmp.eq.s32.totalorder %v469, 2
    %v475 = vxor.u32 %v466, 2147483648
    %v476 = vsel %vm474, %v475, %v467
    %v477 = vsel %vm470, %v473, %v476
    %v478 = vsel %vm468, nan, %v477
    %v479 = vand.u32 2147483647, %v203
    %vm480 = vcmp.le.f32.partialorder %v479, 0.7853982
    %vm481 = vcmp.lt.s32.totalorder %v203, 0
    %v482 = vand.u32 %v203, 2139095040
    %v483 = vshrl.u32 %v482, 23
    %v484 = vsub.s32 %v483, 127
    %v485 = vand.u32 2147483647, %v203
    %v486 = vand.u32 %v485, 8388607
    %v487 = vor.u32 %v486, 8388608
    %v488 = vsub.s32 0, %v487
    %v489 = vadd.s32 %v484, 1
    %vm490 = vcmp.gt.s32.totalorder %v489, 0
    %v491 = vsel %vm490, %v489, 0
    %v492 = vshrl.u32 %v491, 5
    %v493 = vand.u32 %v491, 31
    %v494 = vsub.s32 32, %v493
    %v495 = vshrl.u32 683565275, %v494
    %v496 = vshll.u32 683565275, %v493
    %v497 = vshrl.u32 2475754826, %v494
    %v498 = vor.u32 %v496, %v497
    %v499 = vshll.u32 2475754826, %v493
    %v500 = vshrl.u32 2131351028, %v494
    %v501 = vor.u32 %v499, %v500
    %v502 = vshll.u32 2131351028, %v493
    %v503 = vshrl.u32 2102212464, %v494
    %v504 = vor.u32 %v502, %v503
    %v505 = vshll.u32 2102212464, %v493
    %v506 = vshrl.u32 920167782, %v494
    %v507 = vor.u32 %v505, %v506
    %v508 = vshll.u32 920167782, %v493
    %v509 = vshrl.u32 1326507024, %v494
    %v510 = vor.u32 %v508, %v509
    %vm511 = vcmp.lt.s32.totalorder %v492, 1
    %vm512 = vcmp.lt.s32.totalorder %v492, 2
    %vm513 = vcmp.lt.s32.totalorder %v492, 3
    %vm514 = vcmp.lt.s32.totalorder %v492, 4
    %v515 = vsel %vm511, %v495, %v498
    %v516 = vsel %vm514, %v504, 2102212464
    %v517 = vsel %vm513, %v501, %v516
    %v518 = vsel %vm512, %v515, %v517
    %v519 = vsel %vm511, %v498, %v501
    %v520 = vsel %vm514, %v507, 920167782
    %v521 = vsel %vm513, %v504, %v520
    %v522 = vsel %vm512, %v519, %v521
    %v523 = vsel %vm511, %v501, %v504
    %v524 = vsel %vm514, %v510, 1326507024
    %v525 = vsel %vm513, %v507, %v524
    %v526 = vsel %vm512, %v523, %v525
    %v527 = vshll.u32 %v487, 8
    %v528 = vmul.u32.u64.compose %v527, %v526
    %v529 = vextract.low.u32 %v528
    %v530 = vextract.high.u32 %v528
    %v531 = vmul.u32.u64.compose %v527, %v522
    %v532 = vextract.low.u32 %v531
    %v533 = vextract.high.u32 %v531
    %v534 = vmul.u32 %v527, %v518
    %v535 = vadd.s32 %v530, %v532
    %vm536 = vc.u32 %v530, %v532
    %v537 = vadd.s32 %v533, 1
    %v538 = vsel %vm536, %v537, %v533
    %v539 = vadd.s32 %v534, %v538
    %v540 = vadd.s32 %v539, 536870912
    %v541 = vshrl.u32 %v540, 30
    %v542 = vshll.u32 %v541, 30
    %v543 = vsub.s32 %v539, %v542
    %vm544 = vcmp.lt.s32.totalorder %v543, 0
    %v545 = vsub.s32 0, %v543
    %v546 = vsel %vm544, %v545, %v543
    %v547 = vclz %v546
    %v548 = vsub.s32 %v547, 2
    %vm549 = vcmp.gt.s32.totalorder 0, %v548
    %v550 = vsel %vm549, 0, %v548
    %v551 = vsub.s32 32, %v550
    %v552 = vshll.u32 %v543, %v550
    %v553 = vshrl.u32 %v535, %v551
    %v554 = vor.u32 %v552, %v553
    %v555 = vsub.s32 4294967266, %v550
    %v556 = vadd.s32 %v555, 127
    %v557 = vshll.u32 %v556, 23
    %v558 = vor.u32 4788187, %v557
    %v559 = vand.u32 2147483647, %v558
    %v561 = vcvt.s32.f32 %v554
    %v562 = vmul.f32 %v561, %v559
    %v563 = vxor.u32 %v562, 2147483648
    %v564 = vsel %vm481, %v563, %v562
    %v565 = vsub.s32 4, %v541
    %v566 = vsel %vm481, %v565, %v541
    %v567 = vsel %vm480, %v203, %v564
    %v568 = vsel %vm480, 0, %v566
    %v569 = vcosq.f32.pop %v567
    %v570 = vsinq.f32.pop %v567
    %vm571 = vweird.f32 %v203
    %v572 = vand.u32 %v568, 3
    %vm573 = vcmp.lt.s32.totalorder %v572, 2
    %vm574 = vcmp.eq.s32.totalorder %v572, 0
    %v575 = vxor.u32 %v570, 2147483648
    %v576 = vsel %vm574, %v569, %v575
    %vm577 = vcmp.eq.s32.totalorder %v572, 2
    %v578 = vxor.u32 %v569, 2147483648
    %v579 = vsel %vm577, %v578, %v570
    %v580 = vsel %vm573, %v576, %v579
    %v581 = vsel %vm571, nan, %v580
    %v582 = vand.u32 2147483647, %v208
    %vm583 = vcmp.le.f32.partialorder %v582, 0.7853982
    %vm584 = vcmp.lt.s32.totalorder %v208, 0
    %v585 = vand.u32 %v208, 2139095040
    %v586 = vshrl.u32 %v585, 23
    %v587 = vsub.s32 %v586, 127
    %v588 = vand.u32 2147483647, %v208
    %v589 = vand.u32 %v588, 8388607
    %v590 = vor.u32 %v589, 8388608
    %v591 = vsub.s32 0, %v590
    %v592 = vadd.s32 %v587, 1
    %vm593 = vcmp.gt.s32.totalorder %v592, 0
    %v594 = vsel %vm593, %v592, 0
    %v595 = vshrl.u32 %v594, 5
    %v596 = vand.u32 %v594, 31
    %v597 = vsub.s32 32, %v596
    %v598 = vshrl.u32 683565275, %v597
    %v599 = vshll.u32 683565275, %v596
    %v600 = vshrl.u32 2475754826, %v597
    %v601 = vor.u32 %v599, %v600
    %v602 = vshll.u32 2475754826, %v596
    %v603 = vshrl.u32 2131351028, %v597
    %v604 = vor.u32 %v602, %v603
    %v605 = vshll.u32 2131351028, %v596
    %v606 = vshrl.u32 2102212464, %v597
    %v607 = vor.u32 %v605, %v606
    %v608 = vshll.u32 2102212464, %v596
    %v609 = vshrl.u32 920167782, %v597
    %v610 = vor.u32 %v608, %v609
    %v611 = vshll.u32 920167782, %v596
    %v612 = vshrl.u32 1326507024, %v597
    %v613 = vor.u32 %v611, %v612
    %vm614 = vcmp.lt.s32.totalorder %v595, 1
    %vm615 = vcmp.lt.s32.totalorder %v595, 2
    %vm616 = vcmp.lt.s32.totalorder %v595, 3
    %vm617 = vcmp.lt.s32.totalorder %v595, 4
    %v618 = vsel %vm614, %v598, %v601
    %v619 = vsel %vm617, %v607, 2102212464
    %v620 = vsel %vm616, %v604, %v619
    %v621 = vsel %vm615, %v618, %v620
    %v622 = vsel %vm614, %v601, %v604
    %v623 = vsel %vm617, %v610, 920167782
    %v624 = vsel %vm616, %v607, %v623
    %v625 = vsel %vm615, %v622, %v624
    %v626 = vsel %vm614, %v604, %v607
    %v627 = vsel %vm617, %v613, 1326507024
    %v628 = vsel %vm616, %v610, %v627
    %v629 = vsel %vm615, %v626, %v628
    %v630 = vshll.u32 %v590, 8
    %v631 = vmul.u32.u64.compose %v630, %v629
    %v632 = vextract.low.u32 %v631
    %v633 = vextract.high.u32 %v631
    %v634 = vmul.u32.u64.compose %v630, %v625
    %v635 = vextract.low.u32 %v634
    %v636 = vextract.high.u32 %v634
    %v637 = vmul.u32 %v630, %v621
    %v638 = vadd.s32 %v633, %v635
    %vm639 = vc.u32 %v633, %v635
    %v640 = vadd.s32 %v636, 1
    %v641 = vsel %vm639, %v640, %v636
    %v642 = vadd.s32 %v637, %v641
    %v643 = vadd.s32 %v642, 536870912
    %v644 = vshrl.u32 %v643, 30
    %v645 = vshll.u32 %v644, 30
    %v646 = vsub.s32 %v642, %v645
    %vm647 = vcmp.lt.s32.totalorder %v646, 0
    %v648 = vsub.s32 0, %v646
    %v649 = vsel %vm647, %v648, %v646
    %v650 = vclz %v649
    %v651 = vsub.s32 %v650, 2
    %vm652 = vcmp.gt.s32.totalorder 0, %v651
    %v653 = vsel %vm652, 0, %v651
    %v654 = vsub.s32 32, %v653
    %v655 = vshll.u32 %v646, %v653
    %v656 = vshrl.u32 %v638, %v654
    %v657 = vor.u32 %v655, %v656
    %v658 = vsub.s32 4294967266, %v653
    %v659 = vadd.s32 %v658, 127
    %v660 = vshll.u32 %v659, 23
    %v661 = vor.u32 4788187, %v660
    %v662 = vand.u32 2147483647, %v661
    %v664 = vcvt.s32.f32 %v657
    %v665 = vmul.f32 %v664, %v662
    %v666 = vxor.u32 %v665, 2147483648
    %v667 = vsel %vm584, %v666, %v665
    %v668 = vsub.s32 4, %v644
    %v669 = vsel %vm584, %v668, %v644
    %v670 = vsel %vm583, %v208, %v667
    %v671 = vsel %vm583, 0, %v669
    %v672 = vcosq.f32.pop %v670
    %v673 = vsinq.f32.pop %v670
    %vm674 = vweird.f32 %v208
    %v675 = vand.u32 %v671, 3
    %vm676 = vcmp.lt.s32.totalorder %v675, 2
    %vm677 = vcmp.eq.s32.totalorder %v675, 0
    %v678 = vxor.u32 %v673, 2147483648
    %v679 = vsel %vm677, %v672, %v678
    %vm680 = vcmp.eq.s32.totalorder %v675, 2
    %v681 = vxor.u32 %v672, 2147483648
    %v682 = vsel %vm680, %v681, %v673
    %v683 = vsel %vm676, %v679, %v682
    %v684 = vsel %vm674, nan, %v683
    %v685 = vand.u32 2147483647, %v213
    %vm686 = vcmp.le.f32.partialorder %v685, 0.7853982
    %vm687 = vcmp.lt.s32.totalorder %v213, 0
    %v688 = vand.u32 %v213, 2139095040
    %v689 = vshrl.u32 %v688, 23
    %v690 = vsub.s32 %v689, 127
    %v691 = vand.u32 2147483647, %v213
    %v692 = vand.u32 %v691, 8388607
    %v693 = vor.u32 %v692, 8388608
    %v694 = vsub.s32 0, %v693
    %v695 = vadd.s32 %v690, 1
    %vm696 = vcmp.gt.s32.totalorder %v695, 0
    %v697 = vsel %vm696, %v695, 0
    %v698 = vshrl.u32 %v697, 5
    %v699 = vand.u32 %v697, 31
    %v700 = vsub.s32 32, %v699
    %v701 = vshrl.u32 683565275, %v700
    %v702 = vshll.u32 683565275, %v699
    %v703 = vshrl.u32 2475754826, %v700
    %v704 = vor.u32 %v702, %v703
    %v705 = vshll.u32 2475754826, %v699
    %v706 = vshrl.u32 2131351028, %v700
    %v707 = vor.u32 %v705, %v706
    %v708 = vshll.u32 2131351028, %v699
    %v709 = vshrl.u32 2102212464, %v700
    %v710 = vor.u32 %v708, %v709
    %v711 = vshll.u32 2102212464, %v699
    %v712 = vshrl.u32 920167782, %v700
    %v713 = vor.u32 %v711, %v712
    %v714 = vshll.u32 920167782, %v699
    %v715 = vshrl.u32 1326507024, %v700
    %v716 = vor.u32 %v714, %v715
    %vm717 = vcmp.lt.s32.totalorder %v698, 1
    %vm718 = vcmp.lt.s32.totalorder %v698, 2
    %vm719 = vcmp.lt.s32.totalorder %v698, 3
    %vm720 = vcmp.lt.s32.totalorder %v698, 4
    %v721 = vsel %vm717, %v701, %v704
    %v722 = vsel %vm720, %v710, 2102212464
    %v723 = vsel %vm719, %v707, %v722
    %v724 = vsel %vm718, %v721, %v723
    %v725 = vsel %vm717, %v704, %v707
    %v726 = vsel %vm720, %v713, 920167782
    %v727 = vsel %vm719, %v710, %v726
    %v728 = vsel %vm718, %v725, %v727
    %v729 = vsel %vm717, %v707, %v710
    %v730 = vsel %vm720, %v716, 1326507024
    %v731 = vsel %vm719, %v713, %v730
    %v732 = vsel %vm718, %v729, %v731
    %v733 = vshll.u32 %v693, 8
    %v734 = vmul.u32.u64.compose %v733, %v732
    %v735 = vextract.low.u32 %v734
    %v736 = vextract.high.u32 %v734
    %v737 = vmul.u32.u64.compose %v733, %v728
    %v738 = vextract.low.u32 %v737
    %v739 = vextract.high.u32 %v737
    %v740 = vmul.u32 %v733, %v724
    %v741 = vadd.s32 %v736, %v738
    %vm742 = vc.u32 %v736, %v738
    %v743 = vadd.s32 %v739, 1
    %v744 = vsel %vm742, %v743, %v739
    %v745 = vadd.s32 %v740, %v744
    %v746 = vadd.s32 %v745, 536870912
    %v747 = vshrl.u32 %v746, 30
    %v748 = vshll.u32 %v747, 30
    %v749 = vsub.s32 %v745, %v748
    %vm750 = vcmp.lt.s32.totalorder %v749, 0
    %v751 = vsub.s32 0, %v749
    %v752 = vsel %vm750, %v751, %v749
    %v753 = vclz %v752
    %v754 = vsub.s32 %v753, 2
    %vm755 = vcmp.gt.s32.totalorder 0, %v754
    %v756 = vsel %vm755, 0, %v754
    %v757 = vsub.s32 32, %v756
    %v758 = vshll.u32 %v749, %v756
    %v759 = vshrl.u32 %v741, %v757
    %v760 = vor.u32 %v758, %v759
    %v761 = vsub.s32 4294967266, %v756
    %v762 = vadd.s32 %v761, 127
    %v763 = vshll.u32 %v762, 23
    %v764 = vor.u32 4788187, %v763
    %v765 = vand.u32 2147483647, %v764
    %v767 = vcvt.s32.f32 %v760
    %v768 = vmul.f32 %v767, %v765
    %v769 = vxor.u32 %v768, 2147483648
    %v770 = vsel %vm687, %v769, %v768
    %v771 = vsub.s32 4, %v747
    %v772 = vsel %vm687, %v771, %v747
    %v773 = vsel %vm686, %v213, %v770
    %v774 = vsel %vm686, 0, %v772
    %v775 = vcosq.f32.pop %v773
    %v776 = vsinq.f32.pop %v773
    %vm777 = vweird.f32 %v213
    %v778 = vand.u32 %v774, 3
    %vm779 = vcmp.lt.s32.totalorder %v778, 2
    %vm780 = vcmp.eq.s32.totalorder %v778, 0
    %v781 = vxor.u32 %v776, 2147483648
    %v782 = vsel %vm780, %v775, %v781
    %vm783 = vcmp.eq.s32.totalorder %v778, 2
    %v784 = vxor.u32 %v775, 2147483648
    %v785 = vsel %vm783, %v784, %v776
    %v786 = vsel %vm779, %v782, %v785
    %v787 = vsel %vm777, nan, %v786
    %v788 = vand.u32 2147483647, %v218
    %vm789 = vcmp.le.f32.partialorder %v788, 0.7853982
    %vm790 = vcmp.lt.s32.totalorder %v218, 0
    %v791 = vand.u32 %v218, 2139095040
    %v792 = vshrl.u32 %v791, 23
    %v793 = vsub.s32 %v792, 127
    %v794 = vand.u32 2147483647, %v218
    %v795 = vand.u32 %v794, 8388607
    %v796 = vor.u32 %v795, 8388608
    %v797 = vsub.s32 0, %v796
    %v798 = vadd.s32 %v793, 1
    %vm799 = vcmp.gt.s32.totalorder %v798, 0
    %v800 = vsel %vm799, %v798, 0
    %v801 = vshrl.u32 %v800, 5
    %v802 = vand.u32 %v800, 31
    %v803 = vsub.s32 32, %v802
    %v804 = vshrl.u32 683565275, %v803
    %v805 = vshll.u32 683565275, %v802
    %v806 = vshrl.u32 2475754826, %v803
    %v807 = vor.u32 %v805, %v806
    %v808 = vshll.u32 2475754826, %v802
    %v809 = vshrl.u32 2131351028, %v803
    %v810 = vor.u32 %v808, %v809
    %v811 = vshll.u32 2131351028, %v802
    %v812 = vshrl.u32 2102212464, %v803
    %v813 = vor.u32 %v811, %v812
    %v814 = vshll.u32 2102212464, %v802
    %v815 = vshrl.u32 920167782, %v803
    %v816 = vor.u32 %v814, %v815
    %v817 = vshll.u32 920167782, %v802
    %v818 = vshrl.u32 1326507024, %v803
    %v819 = vor.u32 %v817, %v818
    %vm820 = vcmp.lt.s32.totalorder %v801, 1
    %vm821 = vcmp.lt.s32.totalorder %v801, 2
    %vm822 = vcmp.lt.s32.totalorder %v801, 3
    %vm823 = vcmp.lt.s32.totalorder %v801, 4
    %v824 = vsel %vm820, %v804, %v807
    %v825 = vsel %vm823, %v813, 2102212464
    %v826 = vsel %vm822, %v810, %v825
    %v827 = vsel %vm821, %v824, %v826
    %v828 = vsel %vm820, %v807, %v810
    %v829 = vsel %vm823, %v816, 920167782
    %v830 = vsel %vm822, %v813, %v829
    %v831 = vsel %vm821, %v828, %v830
    %v832 = vsel %vm820, %v810, %v813
    %v833 = vsel %vm823, %v819, 1326507024
    %v834 = vsel %vm822, %v816, %v833
    %v835 = vsel %vm821, %v832, %v834
    %v836 = vshll.u32 %v796, 8
    %v837 = vmul.u32.u64.compose %v836, %v835
    %v838 = vextract.low.u32 %v837
    %v839 = vextract.high.u32 %v837
    %v840 = vmul.u32.u64.compose %v836, %v831
    %v841 = vextract.low.u32 %v840
    %v842 = vextract.high.u32 %v840
    %v843 = vmul.u32 %v836, %v827
    %v844 = vadd.s32 %v839, %v841
    %vm845 = vc.u32 %v839, %v841
    %v846 = vadd.s32 %v842, 1
    %v847 = vsel %vm845, %v846, %v842
    %v848 = vadd.s32 %v843, %v847
    %v849 = vadd.s32 %v848, 536870912
    %v850 = vshrl.u32 %v849, 30
    %v851 = vshll.u32 %v850, 30
    %v852 = vsub.s32 %v848, %v851
    %vm853 = vcmp.lt.s32.totalorder %v852, 0
    %v854 = vsub.s32 0, %v852
    %v855 = vsel %vm853, %v854, %v852
    %v856 = vclz %v855
    %v857 = vsub.s32 %v856, 2
    %vm858 = vcmp.gt.s32.totalorder 0, %v857
    %v859 = vsel %vm858, 0, %v857
    %v860 = vsub.s32 32, %v859
    %v861 = vshll.u32 %v852, %v859
    %v862 = vshrl.u32 %v844, %v860
    %v863 = vor.u32 %v861, %v862
    %v864 = vsub.s32 4294967266, %v859
    %v865 = vadd.s32 %v864, 127
    %v866 = vshll.u32 %v865, 23
    %v867 = vor.u32 4788187, %v866
    %v868 = vand.u32 2147483647, %v867
    %v870 = vcvt.s32.f32 %v863
    %v871 = vmul.f32 %v870, %v868
    %v872 = vxor.u32 %v871, 2147483648
    %v873 = vsel %vm790, %v872, %v871
    %v874 = vsub.s32 4, %v850
    %v875 = vsel %vm790, %v874, %v850
    %v876 = vsel %vm789, %v218, %v873
    %v877 = vsel %vm789, 0, %v875
    %v878 = vcosq.f32.pop %v876
    %v879 = vsinq.f32.pop %v876
    %vm880 = vweird.f32 %v218
    %v881 = vand.u32 %v877, 3
    %vm882 = vcmp.lt.s32.totalorder %v881, 2
    %vm883 = vcmp.eq.s32.totalorder %v881, 0
    %v884 = vxor.u32 %v879, 2147483648
    %v885 = vsel %vm883, %v878, %v884
    %vm886 = vcmp.eq.s32.totalorder %v881, 2
    %v887 = vxor.u32 %v878, 2147483648
    %v888 = vsel %vm886, %v887, %v879
    %v889 = vsel %vm882, %v885, %v888
    %v890 = vsel %vm880, nan, %v889
    %v891 = vand.u32 2147483647, %v223
    %vm892 = vcmp.le.f32.partialorder %v891, 0.7853982
    %vm893 = vcmp.lt.s32.totalorder %v223, 0
    %v894 = vand.u32 %v223, 2139095040
    %v895 = vshrl.u32 %v894, 23
    %v896 = vsub.s32 %v895, 127
    %v897 = vand.u32 2147483647, %v223
    %v898 = vand.u32 %v897, 8388607
    %v899 = vor.u32 %v898, 8388608
    %v900 = vsub.s32 0, %v899
    %v901 = vadd.s32 %v896, 1
    %vm902 = vcmp.gt.s32.totalorder %v901, 0
    %v903 = vsel %vm902, %v901, 0
    %v904 = vshrl.u32 %v903, 5
    %v905 = vand.u32 %v903, 31
    %v906 = vsub.s32 32, %v905
    %v907 = vshrl.u32 683565275, %v906
    %v908 = vshll.u32 683565275, %v905
    %v909 = vshrl.u32 2475754826, %v906
    %v910 = vor.u32 %v908, %v909
    %v911 = vshll.u32 2475754826, %v905
    %v912 = vshrl.u32 2131351028, %v906
    %v913 = vor.u32 %v911, %v912
    %v914 = vshll.u32 2131351028, %v905
    %v915 = vshrl.u32 2102212464, %v906
    %v916 = vor.u32 %v914, %v915
    %v917 = vshll.u32 2102212464, %v905
    %v918 = vshrl.u32 920167782, %v906
    %v919 = vor.u32 %v917, %v918
    %v920 = vshll.u32 920167782, %v905
    %v921 = vshrl.u32 1326507024, %v906
    %v922 = vor.u32 %v920, %v921
    %vm923 = vcmp.lt.s32.totalorder %v904, 1
    %vm924 = vcmp.lt.s32.totalorder %v904, 2
    %vm925 = vcmp.lt.s32.totalorder %v904, 3
    %vm926 = vcmp.lt.s32.totalorder %v904, 4
    %v927 = vsel %vm923, %v907, %v910
    %v928 = vsel %vm926, %v916, 2102212464
    %v929 = vsel %vm925, %v913, %v928
    %v930 = vsel %vm924, %v927, %v929
    %v931 = vsel %vm923, %v910, %v913
    %v932 = vsel %vm926, %v919, 920167782
    %v933 = vsel %vm925, %v916, %v932
    %v934 = vsel %vm924, %v931, %v933
    %v935 = vsel %vm923, %v913, %v916
    %v936 = vsel %vm926, %v922, 1326507024
    %v937 = vsel %vm925, %v919, %v936
    %v938 = vsel %vm924, %v935, %v937
    %v939 = vshll.u32 %v899, 8
    %v940 = vmul.u32.u64.compose %v939, %v938
    %v941 = vextract.low.u32 %v940
    %v942 = vextract.high.u32 %v940
    %v943 = vmul.u32.u64.compose %v939, %v934
    %v944 = vextract.low.u32 %v943
    %v945 = vextract.high.u32 %v943
    %v946 = vmul.u32 %v939, %v930
    %v947 = vadd.s32 %v942, %v944
    %vm948 = vc.u32 %v942, %v944
    %v949 = vadd.s32 %v945, 1
    %v950 = vsel %vm948, %v949, %v945
    %v951 = vadd.s32 %v946, %v950
    %v952 = vadd.s32 %v951, 536870912
    %v953 = vshrl.u32 %v952, 30
    %v954 = vshll.u32 %v953, 30
    %v955 = vsub.s32 %v951, %v954
    %vm956 = vcmp.lt.s32.totalorder %v955, 0
    %v957 = vsub.s32 0, %v955
    %v958 = vsel %vm956, %v957, %v955
    %v959 = vclz %v958
    %v960 = vsub.s32 %v959, 2
    %vm961 = vcmp.gt.s32.totalorder 0, %v960
    %v962 = vsel %vm961, 0, %v960
    %v963 = vsub.s32 32, %v962
    %v964 = vshll.u32 %v955, %v962
    %v965 = vshrl.u32 %v947, %v963
    %v966 = vor.u32 %v964, %v965
    %v967 = vsub.s32 4294967266, %v962
    %v968 = vadd.s32 %v967, 127
    %v969 = vshll.u32 %v968, 23
    %v970 = vor.u32 4788187, %v969
    %v971 = vand.u32 2147483647, %v970
    %v973 = vcvt.s32.f32 %v966
    %v974 = vmul.f32 %v973, %v971
    %v975 = vxor.u32 %v974, 2147483648
    %v976 = vsel %vm893, %v975, %v974
    %v977 = vsub.s32 4, %v953
    %v978 = vsel %vm893, %v977, %v953
    %v979 = vsel %vm892, %v223, %v976
    %v980 = vsel %vm892, 0, %v978
    %v981 = vcosq.f32.pop %v979
    %v982 = vsinq.f32.pop %v979
    %vm983 = vweird.f32 %v223
    %v984 = vand.u32 %v980, 3
    %vm985 = vcmp.lt.s32.totalorder %v984, 2
    %vm986 = vcmp.eq.s32.totalorder %v984, 0
    %v987 = vxor.u32 %v982, 2147483648
    %v988 = vsel %vm986, %v981, %v987
    %vm989 = vcmp.eq.s32.totalorder %v984, 2
    %v990 = vxor.u32 %v981, 2147483648
    %v991 = vsel %vm989, %v990, %v982
    %v992 = vsel %vm985, %v988, %v991
    %v993 = vsel %vm983, nan, %v992
    %v994 = vand.u32 2147483647, %v228
    %vm995 = vcmp.le.f32.partialorder %v994, 0.7853982
    %vm996 = vcmp.lt.s32.totalorder %v228, 0
    %v997 = vand.u32 %v228, 2139095040
    %v998 = vshrl.u32 %v997, 23
    %v999 = vsub.s32 %v998, 127
    %v1000 = vand.u32 2147483647, %v228
    %v1001 = vand.u32 %v1000, 8388607
    %v1002 = vor.u32 %v1001, 8388608
    %v1003 = vsub.s32 0, %v1002
    %v1004 = vadd.s32 %v999, 1
    %vm1005 = vcmp.gt.s32.totalorder %v1004, 0
    %v1006 = vsel %vm1005, %v1004, 0
    %v1007 = vshrl.u32 %v1006, 5
    %v1008 = vand.u32 %v1006, 31
    %v1009 = vsub.s32 32, %v1008
    %v1010 = vshrl.u32 683565275, %v1009
    %v1011 = vshll.u32 683565275, %v1008
    %v1012 = vshrl.u32 2475754826, %v1009
    %v1013 = vor.u32 %v1011, %v1012
    %v1014 = vshll.u32 2475754826, %v1008
    %v1015 = vshrl.u32 2131351028, %v1009
    %v1016 = vor.u32 %v1014, %v1015
    %v1017 = vshll.u32 2131351028, %v1008
    %v1018 = vshrl.u32 2102212464, %v1009
    %v1019 = vor.u32 %v1017, %v1018
    %v1020 = vshll.u32 2102212464, %v1008
    %v1021 = vshrl.u32 920167782, %v1009
    %v1022 = vor.u32 %v1020, %v1021
    %v1023 = vshll.u32 920167782, %v1008
    %v1024 = vshrl.u32 1326507024, %v1009
    %v1025 = vor.u32 %v1023, %v1024
    %vm1026 = vcmp.lt.s32.totalorder %v1007, 1
    %vm1027 = vcmp.lt.s32.totalorder %v1007, 2
    %vm1028 = vcmp.lt.s32.totalorder %v1007, 3
    %vm1029 = vcmp.lt.s32.totalorder %v1007, 4
    %v1030 = vsel %vm1026, %v1010, %v1013
    %v1031 = vsel %vm1029, %v1019, 2102212464
    %v1032 = vsel %vm1028, %v1016, %v1031
    %v1033 = vsel %vm1027, %v1030, %v1032
    %v1034 = vsel %vm1026, %v1013, %v1016
    %v1035 = vsel %vm1029, %v1022, 920167782
    %v1036 = vsel %vm1028, %v1019, %v1035
    %v1037 = vsel %vm1027, %v1034, %v1036
    %v1038 = vsel %vm1026, %v1016, %v1019
    %v1039 = vsel %vm1029, %v1025, 1326507024
    %v1040 = vsel %vm1028, %v1022, %v1039
    %v1041 = vsel %vm1027, %v1038, %v1040
    %v1042 = vshll.u32 %v1002, 8
    %v1043 = vmul.u32.u64.compose %v1042, %v1041
    %v1044 = vextract.low.u32 %v1043
    %v1045 = vextract.high.u32 %v1043
    %v1046 = vmul.u32.u64.compose %v1042, %v1037
    %v1047 = vextract.low.u32 %v1046
    %v1048 = vextract.high.u32 %v1046
    %v1049 = vmul.u32 %v1042, %v1033
    %v1050 = vadd.s32 %v1045, %v1047
    %vm1051 = vc.u32 %v1045, %v1047
    %v1052 = vadd.s32 %v1048, 1
    %v1053 = vsel %vm1051, %v1052, %v1048
    %v1054 = vadd.s32 %v1049, %v1053
    %v1055 = vadd.s32 %v1054, 536870912
    %v1056 = vshrl.u32 %v1055, 30
    %v1057 = vshll.u32 %v1056, 30
    %v1058 = vsub.s32 %v1054, %v1057
    %vm1059 = vcmp.lt.s32.totalorder %v1058, 0
    %v1060 = vsub.s32 0, %v1058
    %v1061 = vsel %vm1059, %v1060, %v1058
    %v1062 = vclz %v1061
    %v1063 = vsub.s32 %v1062, 2
    %vm1064 = vcmp.gt.s32.totalorder 0, %v1063
    %v1065 = vsel %vm1064, 0, %v1063
    %v1066 = vsub.s32 32, %v1065
    %v1067 = vshll.u32 %v1058, %v1065
    %v1068 = vshrl.u32 %v1050, %v1066
    %v1069 = vor.u32 %v1067, %v1068
    %v1070 = vsub.s32 4294967266, %v1065
    %v1071 = vadd.s32 %v1070, 127
    %v1072 = vshll.u32 %v1071, 23
    %v1073 = vor.u32 4788187, %v1072
    %v1074 = vand.u32 2147483647, %v1073
    %v1076 = vcvt.s32.f32 %v1069
    %v1077 = vmul.f32 %v1076, %v1074
    %v1078 = vxor.u32 %v1077, 2147483648
    %v1079 = vsel %vm996, %v1078, %v1077
    %v1080 = vsub.s32 4, %v1056
    %v1081 = vsel %vm996, %v1080, %v1056
    %v1082 = vsel %vm995, %v228, %v1079
    %v1083 = vsel %vm995, 0, %v1081
    %v1084 = vcosq.f32.pop %v1082
    %v1085 = vsinq.f32.pop %v1082
    %vm1086 = vweird.f32 %v228
    %v1087 = vand.u32 %v1083, 3
    %vm1088 = vcmp.lt.s32.totalorder %v1087, 2
    %vm1089 = vcmp.eq.s32.totalorder %v1087, 0
    %v1090 = vxor.u32 %v1085, 2147483648
    %v1091 = vsel %vm1089, %v1084, %v1090
    %vm1092 = vcmp.eq.s32.totalorder %v1087, 2
    %v1093 = vxor.u32 %v1084, 2147483648
    %v1094 = vsel %vm1092, %v1093, %v1085
    %v1095 = vsel %vm1088, %v1091, %v1094
    %v1096 = vsel %vm1086, nan, %v1095
    %v1097 = vand.u32 2147483647, %v233
    %vm1098 = vcmp.le.f32.partialorder %v1097, 0.7853982
    %vm1099 = vcmp.lt.s32.totalorder %v233, 0
    %v1100 = vand.u32 %v233, 2139095040
    %v1101 = vshrl.u32 %v1100, 23
    %v1102 = vsub.s32 %v1101, 127
    %v1103 = vand.u32 2147483647, %v233
    %v1104 = vand.u32 %v1103, 8388607
    %v1105 = vor.u32 %v1104, 8388608
    %v1106 = vsub.s32 0, %v1105
    %v1107 = vadd.s32 %v1102, 1
    %vm1108 = vcmp.gt.s32.totalorder %v1107, 0
    %v1109 = vsel %vm1108, %v1107, 0
    %v1110 = vshrl.u32 %v1109, 5
    %v1111 = vand.u32 %v1109, 31
    %v1112 = vsub.s32 32, %v1111
    %v1113 = vshrl.u32 683565275, %v1112
    %v1114 = vshll.u32 683565275, %v1111
    %v1115 = vshrl.u32 2475754826, %v1112
    %v1116 = vor.u32 %v1114, %v1115
    %v1117 = vshll.u32 2475754826, %v1111
    %v1118 = vshrl.u32 2131351028, %v1112
    %v1119 = vor.u32 %v1117, %v1118
    %v1120 = vshll.u32 2131351028, %v1111
    %v1121 = vshrl.u32 2102212464, %v1112
    %v1122 = vor.u32 %v1120, %v1121
    %v1123 = vshll.u32 2102212464, %v1111
    %v1124 = vshrl.u32 920167782, %v1112
    %v1125 = vor.u32 %v1123, %v1124
    %v1126 = vshll.u32 920167782, %v1111
    %v1127 = vshrl.u32 1326507024, %v1112
    %v1128 = vor.u32 %v1126, %v1127
    %vm1129 = vcmp.lt.s32.totalorder %v1110, 1
    %vm1130 = vcmp.lt.s32.totalorder %v1110, 2
    %vm1131 = vcmp.lt.s32.totalorder %v1110, 3
    %vm1132 = vcmp.lt.s32.totalorder %v1110, 4
    %v1133 = vsel %vm1129, %v1113, %v1116
    %v1134 = vsel %vm1132, %v1122, 2102212464
    %v1135 = vsel %vm1131, %v1119, %v1134
    %v1136 = vsel %vm1130, %v1133, %v1135
    %v1137 = vsel %vm1129, %v1116, %v1119
    %v1138 = vsel %vm1132, %v1125, 920167782
    %v1139 = vsel %vm1131, %v1122, %v1138
    %v1140 = vsel %vm1130, %v1137, %v1139
    %v1141 = vsel %vm1129, %v1119, %v1122
    %v1142 = vsel %vm1132, %v1128, 1326507024
    %v1143 = vsel %vm1131, %v1125, %v1142
    %v1144 = vsel %vm1130, %v1141, %v1143
    %v1145 = vshll.u32 %v1105, 8
    %v1146 = vmul.u32.u64.compose %v1145, %v1144
    %v1147 = vextract.low.u32 %v1146
    %v1148 = vextract.high.u32 %v1146
    %v1149 = vmul.u32.u64.compose %v1145, %v1140
    %v1150 = vextract.low.u32 %v1149
    %v1151 = vextract.high.u32 %v1149
    %v1152 = vmul.u32 %v1145, %v1136
    %v1153 = vadd.s32 %v1148, %v1150
    %vm1154 = vc.u32 %v1148, %v1150
    %v1155 = vadd.s32 %v1151, 1
    %v1156 = vsel %vm1154, %v1155, %v1151
    %v1157 = vadd.s32 %v1152, %v1156
    %v1158 = vadd.s32 %v1157, 536870912
    %v1159 = vshrl.u32 %v1158, 30
    %v1160 = vshll.u32 %v1159, 30
    %v1161 = vsub.s32 %v1157, %v1160
    %vm1162 = vcmp.lt.s32.totalorder %v1161, 0
    %v1163 = vsub.s32 0, %v1161
    %v1164 = vsel %vm1162, %v1163, %v1161
    %v1165 = vclz %v1164
    %v1166 = vsub.s32 %v1165, 2
    %vm1167 = vcmp.gt.s32.totalorder 0, %v1166
    %v1168 = vsel %vm1167, 0, %v1166
    %v1169 = vsub.s32 32, %v1168
    %v1170 = vshll.u32 %v1161, %v1168
    %v1171 = vshrl.u32 %v1153, %v1169
    %v1172 = vor.u32 %v1170, %v1171
    %v1173 = vsub.s32 4294967266, %v1168
    %v1174 = vadd.s32 %v1173, 127
    %v1175 = vshll.u32 %v1174, 23
    %v1176 = vor.u32 4788187, %v1175
    %v1177 = vand.u32 2147483647, %v1176
    %v1179 = vcvt.s32.f32 %v1172
    %v1180 = vmul.f32 %v1179, %v1177
    %v1181 = vxor.u32 %v1180, 2147483648
    %v1182 = vsel %vm1099, %v1181, %v1180
    %v1183 = vsub.s32 4, %v1159
    %v1184 = vsel %vm1099, %v1183, %v1159
    %v1185 = vsel %vm1098, %v233, %v1182
    %v1186 = vsel %vm1098, 0, %v1184
    %v1187 = vcosq.f32.pop %v1185
    %v1188 = vsinq.f32.pop %v1185
    %vm1189 = vweird.f32 %v233
    %v1190 = vand.u32 %v1186, 3
    %vm1191 = vcmp.lt.s32.totalorder %v1190, 2
    %vm1192 = vcmp.eq.s32.totalorder %v1190, 0
    %v1193 = vxor.u32 %v1188, 2147483648
    %v1194 = vsel %vm1192, %v1187, %v1193
    %vm1195 = vcmp.eq.s32.totalorder %v1190, 2
    %v1196 = vxor.u32 %v1187, 2147483648
    %v1197 = vsel %vm1195, %v1196, %v1188
    %v1198 = vsel %vm1191, %v1194, %v1197
    %v1199 = vsel %vm1189, nan, %v1198
    %v1200 = vand.u32 2147483647, %v238
    %vm1201 = vcmp.le.f32.partialorder %v1200, 0.7853982
    %vm1202 = vcmp.lt.s32.totalorder %v238, 0
    %v1203 = vand.u32 %v238, 2139095040
    %v1204 = vshrl.u32 %v1203, 23
    %v1205 = vsub.s32 %v1204, 127
    %v1206 = vand.u32 2147483647, %v238
    %v1207 = vand.u32 %v1206, 8388607
    %v1208 = vor.u32 %v1207, 8388608
    %v1209 = vsub.s32 0, %v1208
    %v1210 = vadd.s32 %v1205, 1
    %vm1211 = vcmp.gt.s32.totalorder %v1210, 0
    %v1212 = vsel %vm1211, %v1210, 0
    %v1213 = vshrl.u32 %v1212, 5
    %v1214 = vand.u32 %v1212, 31
    %v1215 = vsub.s32 32, %v1214
    %v1216 = vshrl.u32 683565275, %v1215
    %v1217 = vshll.u32 683565275, %v1214
    %v1218 = vshrl.u32 2475754826, %v1215
    %v1219 = vor.u32 %v1217, %v1218
    %v1220 = vshll.u32 2475754826, %v1214
    %v1221 = vshrl.u32 2131351028, %v1215
    %v1222 = vor.u32 %v1220, %v1221
    %v1223 = vshll.u32 2131351028, %v1214
    %v1224 = vshrl.u32 2102212464, %v1215
    %v1225 = vor.u32 %v1223, %v1224
    %v1226 = vshll.u32 2102212464, %v1214
    %v1227 = vshrl.u32 920167782, %v1215
    %v1228 = vor.u32 %v1226, %v1227
    %v1229 = vshll.u32 920167782, %v1214
    %v1230 = vshrl.u32 1326507024, %v1215
    %v1231 = vor.u32 %v1229, %v1230
    %vm1232 = vcmp.lt.s32.totalorder %v1213, 1
    %vm1233 = vcmp.lt.s32.totalorder %v1213, 2
    %vm1234 = vcmp.lt.s32.totalorder %v1213, 3
    %vm1235 = vcmp.lt.s32.totalorder %v1213, 4
    %v1236 = vsel %vm1232, %v1216, %v1219
    %v1237 = vsel %vm1235, %v1225, 2102212464
    %v1238 = vsel %vm1234, %v1222, %v1237
    %v1239 = vsel %vm1233, %v1236, %v1238
    %v1240 = vsel %vm1232, %v1219, %v1222
    %v1241 = vsel %vm1235, %v1228, 920167782
    %v1242 = vsel %vm1234, %v1225, %v1241
    %v1243 = vsel %vm1233, %v1240, %v1242
    %v1244 = vsel %vm1232, %v1222, %v1225
    %v1245 = vsel %vm1235, %v1231, 1326507024
    %v1246 = vsel %vm1234, %v1228, %v1245
    %v1247 = vsel %vm1233, %v1244, %v1246
    %v1248 = vshll.u32 %v1208, 8
    %v1249 = vmul.u32.u64.compose %v1248, %v1247
    %v1250 = vextract.low.u32 %v1249
    %v1251 = vextract.high.u32 %v1249
    %v1252 = vmul.u32.u64.compose %v1248, %v1243
    %v1253 = vextract.low.u32 %v1252
    %v1254 = vextract.high.u32 %v1252
    %v1255 = vmul.u32 %v1248, %v1239
    %v1256 = vadd.s32 %v1251, %v1253
    %vm1257 = vc.u32 %v1251, %v1253
    %v1258 = vadd.s32 %v1254, 1
    %v1259 = vsel %vm1257, %v1258, %v1254
    %v1260 = vadd.s32 %v1255, %v1259
    %v1261 = vadd.s32 %v1260, 536870912
    %v1262 = vshrl.u32 %v1261, 30
    %v1263 = vshll.u32 %v1262, 30
    %v1264 = vsub.s32 %v1260, %v1263
    %vm1265 = vcmp.lt.s32.totalorder %v1264, 0
    %v1266 = vsub.s32 0, %v1264
    %v1267 = vsel %vm1265, %v1266, %v1264
    %v1268 = vclz %v1267
    %v1269 = vsub.s32 %v1268, 2
    %vm1270 = vcmp.gt.s32.totalorder 0, %v1269
    %v1271 = vsel %vm1270, 0, %v1269
    %v1272 = vsub.s32 32, %v1271
    %v1273 = vshll.u32 %v1264, %v1271
    %v1274 = vshrl.u32 %v1256, %v1272
    %v1275 = vor.u32 %v1273, %v1274
    %v1276 = vsub.s32 4294967266, %v1271
    %v1277 = vadd.s32 %v1276, 127
    %v1278 = vshll.u32 %v1277, 23
    %v1279 = vor.u32 4788187, %v1278
    %v1280 = vand.u32 2147483647, %v1279
    %v1282 = vcvt.s32.f32 %v1275
    %v1283 = vmul.f32 %v1282, %v1280
    %v1284 = vxor.u32 %v1283, 2147483648
    %v1285 = vsel %vm1202, %v1284, %v1283
    %v1286 = vsub.s32 4, %v1262
    %v1287 = vsel %vm1202, %v1286, %v1262
    %v1288 = vsel %vm1201, %v238, %v1285
    %v1289 = vsel %vm1201, 0, %v1287
    %v1290 = vcosq.f32.pop %v1288
    %v1291 = vsinq.f32.pop %v1288
    %vm1292 = vweird.f32 %v238
    %v1293 = vand.u32 %v1289, 3
    %vm1294 = vcmp.lt.s32.totalorder %v1293, 2
    %vm1295 = vcmp.eq.s32.totalorder %v1293, 0
    %v1296 = vxor.u32 %v1291, 2147483648
    %v1297 = vsel %vm1295, %v1290, %v1296
    %vm1298 = vcmp.eq.s32.totalorder %v1293, 2
    %v1299 = vxor.u32 %v1290, 2147483648
    %v1300 = vsel %vm1298, %v1299, %v1291
    %v1301 = vsel %vm1294, %v1297, %v1300
    %v1302 = vsel %vm1292, nan, %v1301
    %v1303 = vand.u32 2147483647, %v243
    %vm1304 = vcmp.le.f32.partialorder %v1303, 0.7853982
    %vm1305 = vcmp.lt.s32.totalorder %v243, 0
    %v1306 = vand.u32 %v243, 2139095040
    %v1307 = vshrl.u32 %v1306, 23
    %v1308 = vsub.s32 %v1307, 127
    %v1309 = vand.u32 2147483647, %v243
    %v1310 = vand.u32 %v1309, 8388607
    %v1311 = vor.u32 %v1310, 8388608
    %v1312 = vsub.s32 0, %v1311
    %v1313 = vadd.s32 %v1308, 1
    %vm1314 = vcmp.gt.s32.totalorder %v1313, 0
    %v1315 = vsel %vm1314, %v1313, 0
    %v1316 = vshrl.u32 %v1315, 5
    %v1317 = vand.u32 %v1315, 31
    %v1318 = vsub.s32 32, %v1317
    %v1319 = vshrl.u32 683565275, %v1318
    %v1320 = vshll.u32 683565275, %v1317
    %v1321 = vshrl.u32 2475754826, %v1318
    %v1322 = vor.u32 %v1320, %v1321
    %v1323 = vshll.u32 2475754826, %v1317
    %v1324 = vshrl.u32 2131351028, %v1318
    %v1325 = vor.u32 %v1323, %v1324
    %v1326 = vshll.u32 2131351028, %v1317
    %v1327 = vshrl.u32 2102212464, %v1318
    %v1328 = vor.u32 %v1326, %v1327
    %v1329 = vshll.u32 2102212464, %v1317
    %v1330 = vshrl.u32 920167782, %v1318
    %v1331 = vor.u32 %v1329, %v1330
    %v1332 = vshll.u32 920167782, %v1317
    %v1333 = vshrl.u32 1326507024, %v1318
    %v1334 = vor.u32 %v1332, %v1333
    %vm1335 = vcmp.lt.s32.totalorder %v1316, 1
    %vm1336 = vcmp.lt.s32.totalorder %v1316, 2
    %vm1337 = vcmp.lt.s32.totalorder %v1316, 3
    %vm1338 = vcmp.lt.s32.totalorder %v1316, 4
    %v1339 = vsel %vm1335, %v1319, %v1322
    %v1340 = vsel %vm1338, %v1328, 2102212464
    %v1341 = vsel %vm1337, %v1325, %v1340
    %v1342 = vsel %vm1336, %v1339, %v1341
    %v1343 = vsel %vm1335, %v1322, %v1325
    %v1344 = vsel %vm1338, %v1331, 920167782
    %v1345 = vsel %vm1337, %v1328, %v1344
    %v1346 = vsel %vm1336, %v1343, %v1345
    %v1347 = vsel %vm1335, %v1325, %v1328
    %v1348 = vsel %vm1338, %v1334, 1326507024
    %v1349 = vsel %vm1337, %v1331, %v1348
    %v1350 = vsel %vm1336, %v1347, %v1349
    %v1351 = vshll.u32 %v1311, 8
    %v1352 = vmul.u32.u64.compose %v1351, %v1350
    %v1353 = vextract.low.u32 %v1352
    %v1354 = vextract.high.u32 %v1352
    %v1355 = vmul.u32.u64.compose %v1351, %v1346
    %v1356 = vextract.low.u32 %v1355
    %v1357 = vextract.high.u32 %v1355
    %v1358 = vmul.u32 %v1351, %v1342
    %v1359 = vadd.s32 %v1354, %v1356
    %vm1360 = vc.u32 %v1354, %v1356
    %v1361 = vadd.s32 %v1357, 1
    %v1362 = vsel %vm1360, %v1361, %v1357
    %v1363 = vadd.s32 %v1358, %v1362
    %v1364 = vadd.s32 %v1363, 536870912
    %v1365 = vshrl.u32 %v1364, 30
    %v1366 = vshll.u32 %v1365, 30
    %v1367 = vsub.s32 %v1363, %v1366
    %vm1368 = vcmp.lt.s32.totalorder %v1367, 0
    %v1369 = vsub.s32 0, %v1367
    %v1370 = vsel %vm1368, %v1369, %v1367
    %v1371 = vclz %v1370
    %v1372 = vsub.s32 %v1371, 2
    %vm1373 = vcmp.gt.s32.totalorder 0, %v1372
    %v1374 = vsel %vm1373, 0, %v1372
    %v1375 = vsub.s32 32, %v1374
    %v1376 = vshll.u32 %v1367, %v1374
    %v1377 = vshrl.u32 %v1359, %v1375
    %v1378 = vor.u32 %v1376, %v1377
    %v1379 = vsub.s32 4294967266, %v1374
    %v1380 = vadd.s32 %v1379, 127
    %v1381 = vshll.u32 %v1380, 23
    %v1382 = vor.u32 4788187, %v1381
    %v1383 = vand.u32 2147483647, %v1382
    %v1385 = vcvt.s32.f32 %v1378
    %v1386 = vmul.f32 %v1385, %v1383
    %v1387 = vxor.u32 %v1386, 2147483648
    %v1388 = vsel %vm1305, %v1387, %v1386
    %v1389 = vsub.s32 4, %v1365
    %v1390 = vsel %vm1305, %v1389, %v1365
    %v1391 = vsel %vm1304, %v243, %v1388
    %v1392 = vsel %vm1304, 0, %v1390
    %v1393 = vcosq.f32.pop %v1391
    %v1394 = vsinq.f32.pop %v1391
    %vm1395 = vweird.f32 %v243
    %v1396 = vand.u32 %v1392, 3
    %vm1397 = vcmp.lt.s32.totalorder %v1396, 2
    %vm1398 = vcmp.eq.s32.totalorder %v1396, 0
    %v1399 = vxor.u32 %v1394, 2147483648
    %v1400 = vsel %vm1398, %v1393, %v1399
    %vm1401 = vcmp.eq.s32.totalorder %v1396, 2
    %v1402 = vxor.u32 %v1393, 2147483648
    %v1403 = vsel %vm1401, %v1402, %v1394
    %v1404 = vsel %vm1397, %v1400, %v1403
    %v1405 = vsel %vm1395, nan, %v1404
    %v1406 = vand.u32 2147483647, %v248
    %vm1407 = vcmp.le.f32.partialorder %v1406, 0.7853982
    %vm1408 = vcmp.lt.s32.totalorder %v248, 0
    %v1409 = vand.u32 %v248, 2139095040
    %v1410 = vshrl.u32 %v1409, 23
    %v1411 = vsub.s32 %v1410, 127
    %v1412 = vand.u32 2147483647, %v248
    %v1413 = vand.u32 %v1412, 8388607
    %v1414 = vor.u32 %v1413, 8388608
    %v1415 = vsub.s32 0, %v1414
    %v1416 = vadd.s32 %v1411, 1
    %vm1417 = vcmp.gt.s32.totalorder %v1416, 0
    %v1418 = vsel %vm1417, %v1416, 0
    %v1419 = vshrl.u32 %v1418, 5
    %v1420 = vand.u32 %v1418, 31
    %v1421 = vsub.s32 32, %v1420
    %v1422 = vshrl.u32 683565275, %v1421
    %v1423 = vshll.u32 683565275, %v1420
    %v1424 = vshrl.u32 2475754826, %v1421
    %v1425 = vor.u32 %v1423, %v1424
    %v1426 = vshll.u32 2475754826, %v1420
    %v1427 = vshrl.u32 2131351028, %v1421
    %v1428 = vor.u32 %v1426, %v1427
    %v1429 = vshll.u32 2131351028, %v1420
    %v1430 = vshrl.u32 2102212464, %v1421
    %v1431 = vor.u32 %v1429, %v1430
    %v1432 = vshll.u32 2102212464, %v1420
    %v1433 = vshrl.u32 920167782, %v1421
    %v1434 = vor.u32 %v1432, %v1433
    %v1435 = vshll.u32 920167782, %v1420
    %v1436 = vshrl.u32 1326507024, %v1421
    %v1437 = vor.u32 %v1435, %v1436
    %vm1438 = vcmp.lt.s32.totalorder %v1419, 1
    %vm1439 = vcmp.lt.s32.totalorder %v1419, 2
    %vm1440 = vcmp.lt.s32.totalorder %v1419, 3
    %vm1441 = vcmp.lt.s32.totalorder %v1419, 4
    %v1442 = vsel %vm1438, %v1422, %v1425
    %v1443 = vsel %vm1441, %v1431, 2102212464
    %v1444 = vsel %vm1440, %v1428, %v1443
    %v1445 = vsel %vm1439, %v1442, %v1444
    %v1446 = vsel %vm1438, %v1425, %v1428
    %v1447 = vsel %vm1441, %v1434, 920167782
    %v1448 = vsel %vm1440, %v1431, %v1447
    %v1449 = vsel %vm1439, %v1446, %v1448
    %v1450 = vsel %vm1438, %v1428, %v1431
    %v1451 = vsel %vm1441, %v1437, 1326507024
    %v1452 = vsel %vm1440, %v1434, %v1451
    %v1453 = vsel %vm1439, %v1450, %v1452
    %v1454 = vshll.u32 %v1414, 8
    %v1455 = vmul.u32.u64.compose %v1454, %v1453
    %v1456 = vextract.low.u32 %v1455
    %v1457 = vextract.high.u32 %v1455
    %v1458 = vmul.u32.u64.compose %v1454, %v1449
    %v1459 = vextract.low.u32 %v1458
    %v1460 = vextract.high.u32 %v1458
    %v1461 = vmul.u32 %v1454, %v1445
    %v1462 = vadd.s32 %v1457, %v1459
    %vm1463 = vc.u32 %v1457, %v1459
    %v1464 = vadd.s32 %v1460, 1
    %v1465 = vsel %vm1463, %v1464, %v1460
    %v1466 = vadd.s32 %v1461, %v1465
    %v1467 = vadd.s32 %v1466, 536870912
    %v1468 = vshrl.u32 %v1467, 30
    %v1469 = vshll.u32 %v1468, 30
    %v1470 = vsub.s32 %v1466, %v1469
    %vm1471 = vcmp.lt.s32.totalorder %v1470, 0
    %v1472 = vsub.s32 0, %v1470
    %v1473 = vsel %vm1471, %v1472, %v1470
    %v1474 = vclz %v1473
    %v1475 = vsub.s32 %v1474, 2
    %vm1476 = vcmp.gt.s32.totalorder 0, %v1475
    %v1477 = vsel %vm1476, 0, %v1475
    %v1478 = vsub.s32 32, %v1477
    %v1479 = vshll.u32 %v1470, %v1477
    %v1480 = vshrl.u32 %v1462, %v1478
    %v1481 = vor.u32 %v1479, %v1480
    %v1482 = vsub.s32 4294967266, %v1477
    %v1483 = vadd.s32 %v1482, 127
    %v1484 = vshll.u32 %v1483, 23
    %v1485 = vor.u32 4788187, %v1484
    %v1486 = vand.u32 2147483647, %v1485
    %v1488 = vcvt.s32.f32 %v1481
    %v1489 = vmul.f32 %v1488, %v1486
    %v1490 = vxor.u32 %v1489, 2147483648
    %v1491 = vsel %vm1408, %v1490, %v1489
    %v1492 = vsub.s32 4, %v1468
    %v1493 = vsel %vm1408, %v1492, %v1468
    %v1494 = vsel %vm1407, %v248, %v1491
    %v1495 = vsel %vm1407, 0, %v1493
    %v1496 = vcosq.f32.pop %v1494
    %v1497 = vsinq.f32.pop %v1494
    %vm1498 = vweird.f32 %v248
    %v1499 = vand.u32 %v1495, 3
    %vm1500 = vcmp.lt.s32.totalorder %v1499, 2
    %vm1501 = vcmp.eq.s32.totalorder %v1499, 0
    %v1502 = vxor.u32 %v1497, 2147483648
    %v1503 = vsel %vm1501, %v1496, %v1502
    %vm1504 = vcmp.eq.s32.totalorder %v1499, 2
    %v1505 = vxor.u32 %v1496, 2147483648
    %v1506 = vsel %vm1504, %v1505, %v1497
    %v1507 = vsel %vm1500, %v1503, %v1506
    %v1508 = vsel %vm1498, nan, %v1507
    %v1509 = vand.u32 2147483647, %v253
    %vm1510 = vcmp.le.f32.partialorder %v1509, 0.7853982
    %vm1511 = vcmp.lt.s32.totalorder %v253, 0
    %v1512 = vand.u32 %v253, 2139095040
    %v1513 = vshrl.u32 %v1512, 23
    %v1514 = vsub.s32 %v1513, 127
    %v1515 = vand.u32 2147483647, %v253
    %v1516 = vand.u32 %v1515, 8388607
    %v1517 = vor.u32 %v1516, 8388608
    %v1518 = vsub.s32 0, %v1517
    %v1519 = vadd.s32 %v1514, 1
    %vm1520 = vcmp.gt.s32.totalorder %v1519, 0
    %v1521 = vsel %vm1520, %v1519, 0
    %v1522 = vshrl.u32 %v1521, 5
    %v1523 = vand.u32 %v1521, 31
    %v1524 = vsub.s32 32, %v1523
    %v1525 = vshrl.u32 683565275, %v1524
    %v1526 = vshll.u32 683565275, %v1523
    %v1527 = vshrl.u32 2475754826, %v1524
    %v1528 = vor.u32 %v1526, %v1527
    %v1529 = vshll.u32 2475754826, %v1523
    %v1530 = vshrl.u32 2131351028, %v1524
    %v1531 = vor.u32 %v1529, %v1530
    %v1532 = vshll.u32 2131351028, %v1523
    %v1533 = vshrl.u32 2102212464, %v1524
    %v1534 = vor.u32 %v1532, %v1533
    %v1535 = vshll.u32 2102212464, %v1523
    %v1536 = vshrl.u32 920167782, %v1524
    %v1537 = vor.u32 %v1535, %v1536
    %v1538 = vshll.u32 920167782, %v1523
    %v1539 = vshrl.u32 1326507024, %v1524
    %v1540 = vor.u32 %v1538, %v1539
    %vm1541 = vcmp.lt.s32.totalorder %v1522, 1
    %vm1542 = vcmp.lt.s32.totalorder %v1522, 2
    %vm1543 = vcmp.lt.s32.totalorder %v1522, 3
    %vm1544 = vcmp.lt.s32.totalorder %v1522, 4
    %v1545 = vsel %vm1541, %v1525, %v1528
    %v1546 = vsel %vm1544, %v1534, 2102212464
    %v1547 = vsel %vm1543, %v1531, %v1546
    %v1548 = vsel %vm1542, %v1545, %v1547
    %v1549 = vsel %vm1541, %v1528, %v1531
    %v1550 = vsel %vm1544, %v1537, 920167782
    %v1551 = vsel %vm1543, %v1534, %v1550
    %v1552 = vsel %vm1542, %v1549, %v1551
    %v1553 = vsel %vm1541, %v1531, %v1534
    %v1554 = vsel %vm1544, %v1540, 1326507024
    %v1555 = vsel %vm1543, %v1537, %v1554
    %v1556 = vsel %vm1542, %v1553, %v1555
    %v1557 = vshll.u32 %v1517, 8
    %v1558 = vmul.u32.u64.compose %v1557, %v1556
    %v1559 = vextract.low.u32 %v1558
    %v1560 = vextract.high.u32 %v1558
    %v1561 = vmul.u32.u64.compose %v1557, %v1552
    %v1562 = vextract.low.u32 %v1561
    %v1563 = vextract.high.u32 %v1561
    %v1564 = vmul.u32 %v1557, %v1548
    %v1565 = vadd.s32 %v1560, %v1562
    %vm1566 = vc.u32 %v1560, %v1562
    %v1567 = vadd.s32 %v1563, 1
    %v1568 = vsel %vm1566, %v1567, %v1563
    %v1569 = vadd.s32 %v1564, %v1568
    %v1570 = vadd.s32 %v1569, 536870912
    %v1571 = vshrl.u32 %v1570, 30
    %v1572 = vshll.u32 %v1571, 30
    %v1573 = vsub.s32 %v1569, %v1572
    %vm1574 = vcmp.lt.s32.totalorder %v1573, 0
    %v1575 = vsub.s32 0, %v1573
    %v1576 = vsel %vm1574, %v1575, %v1573
    %v1577 = vclz %v1576
    %v1578 = vsub.s32 %v1577, 2
    %vm1579 = vcmp.gt.s32.totalorder 0, %v1578
    %v1580 = vsel %vm1579, 0, %v1578
    %v1581 = vsub.s32 32, %v1580
    %v1582 = vshll.u32 %v1573, %v1580
    %v1583 = vshrl.u32 %v1565, %v1581
    %v1584 = vor.u32 %v1582, %v1583
    %v1585 = vsub.s32 4294967266, %v1580
    %v1586 = vadd.s32 %v1585, 127
    %v1587 = vshll.u32 %v1586, 23
    %v1588 = vor.u32 4788187, %v1587
    %v1589 = vand.u32 2147483647, %v1588
    %v1591 = vcvt.s32.f32 %v1584
    %v1592 = vmul.f32 %v1591, %v1589
    %v1593 = vxor.u32 %v1592, 2147483648
    %v1594 = vsel %vm1511, %v1593, %v1592
    %v1595 = vsub.s32 4, %v1571
    %v1596 = vsel %vm1511, %v1595, %v1571
    %v1597 = vsel %vm1510, %v253, %v1594
    %v1598 = vsel %vm1510, 0, %v1596
    %v1599 = vcosq.f32.pop %v1597
    %v1600 = vsinq.f32.pop %v1597
    %vm1601 = vweird.f32 %v253
    %v1602 = vand.u32 %v1598, 3
    %vm1603 = vcmp.lt.s32.totalorder %v1602, 2
    %vm1604 = vcmp.eq.s32.totalorder %v1602, 0
    %v1605 = vxor.u32 %v1600, 2147483648
    %v1606 = vsel %vm1604, %v1599, %v1605
    %vm1607 = vcmp.eq.s32.totalorder %v1602, 2
    %v1608 = vxor.u32 %v1599, 2147483648
    %v1609 = vsel %vm1607, %v1608, %v1600
    %v1610 = vsel %vm1603, %v1606, %v1609
    %v1611 = vsel %vm1601, nan, %v1610
    %v1612 = vand.u32 2147483647, %v258
    %vm1613 = vcmp.le.f32.partialorder %v1612, 0.7853982
    %vm1614 = vcmp.lt.s32.totalorder %v258, 0
    %v1615 = vand.u32 %v258, 2139095040
    %v1616 = vshrl.u32 %v1615, 23
    %v1617 = vsub.s32 %v1616, 127
    %v1618 = vand.u32 2147483647, %v258
    %v1619 = vand.u32 %v1618, 8388607
    %v1620 = vor.u32 %v1619, 8388608
    %v1621 = vsub.s32 0, %v1620
    %v1622 = vadd.s32 %v1617, 1
    %vm1623 = vcmp.gt.s32.totalorder %v1622, 0
    %v1624 = vsel %vm1623, %v1622, 0
    %v1625 = vshrl.u32 %v1624, 5
    %v1626 = vand.u32 %v1624, 31
    %v1627 = vsub.s32 32, %v1626
    %v1628 = vshrl.u32 683565275, %v1627
    %v1629 = vshll.u32 683565275, %v1626
    %v1630 = vshrl.u32 2475754826, %v1627
    %v1631 = vor.u32 %v1629, %v1630
    %v1632 = vshll.u32 2475754826, %v1626
    %v1633 = vshrl.u32 2131351028, %v1627
    %v1634 = vor.u32 %v1632, %v1633
    %v1635 = vshll.u32 2131351028, %v1626
    %v1636 = vshrl.u32 2102212464, %v1627
    %v1637 = vor.u32 %v1635, %v1636
    %v1638 = vshll.u32 2102212464, %v1626
    %v1639 = vshrl.u32 920167782, %v1627
    %v1640 = vor.u32 %v1638, %v1639
    %v1641 = vshll.u32 920167782, %v1626
    %v1642 = vshrl.u32 1326507024, %v1627
    %v1643 = vor.u32 %v1641, %v1642
    %vm1644 = vcmp.lt.s32.totalorder %v1625, 1
    %vm1645 = vcmp.lt.s32.totalorder %v1625, 2
    %vm1646 = vcmp.lt.s32.totalorder %v1625, 3
    %vm1647 = vcmp.lt.s32.totalorder %v1625, 4
    %v1648 = vsel %vm1644, %v1628, %v1631
    %v1649 = vsel %vm1647, %v1637, 2102212464
    %v1650 = vsel %vm1646, %v1634, %v1649
    %v1651 = vsel %vm1645, %v1648, %v1650
    %v1652 = vsel %vm1644, %v1631, %v1634
    %v1653 = vsel %vm1647, %v1640, 920167782
    %v1654 = vsel %vm1646, %v1637, %v1653
    %v1655 = vsel %vm1645, %v1652, %v1654
    %v1656 = vsel %vm1644, %v1634, %v1637
    %v1657 = vsel %vm1647, %v1643, 1326507024
    %v1658 = vsel %vm1646, %v1640, %v1657
    %v1659 = vsel %vm1645, %v1656, %v1658
    %v1660 = vshll.u32 %v1620, 8
    %v1661 = vmul.u32.u64.compose %v1660, %v1659
    %v1662 = vextract.low.u32 %v1661
    %v1663 = vextract.high.u32 %v1661
    %v1664 = vmul.u32.u64.compose %v1660, %v1655
    %v1665 = vextract.low.u32 %v1664
    %v1666 = vextract.high.u32 %v1664
    %v1667 = vmul.u32 %v1660, %v1651
    %v1668 = vadd.s32 %v1663, %v1665
    %vm1669 = vc.u32 %v1663, %v1665
    %v1670 = vadd.s32 %v1666, 1
    %v1671 = vsel %vm1669, %v1670, %v1666
    %v1672 = vadd.s32 %v1667, %v1671
    %v1673 = vadd.s32 %v1672, 536870912
    %v1674 = vshrl.u32 %v1673, 30
    %v1675 = vshll.u32 %v1674, 30
    %v1676 = vsub.s32 %v1672, %v1675
    %vm1677 = vcmp.lt.s32.totalorder %v1676, 0
    %v1678 = vsub.s32 0, %v1676
    %v1679 = vsel %vm1677, %v1678, %v1676
    %v1680 = vclz %v1679
    %v1681 = vsub.s32 %v1680, 2
    %vm1682 = vcmp.gt.s32.totalorder 0, %v1681
    %v1683 = vsel %vm1682, 0, %v1681
    %v1684 = vsub.s32 32, %v1683
    %v1685 = vshll.u32 %v1676, %v1683
    %v1686 = vshrl.u32 %v1668, %v1684
    %v1687 = vor.u32 %v1685, %v1686
    %v1688 = vsub.s32 4294967266, %v1683
    %v1689 = vadd.s32 %v1688, 127
    %v1690 = vshll.u32 %v1689, 23
    %v1691 = vor.u32 4788187, %v1690
    %v1692 = vand.u32 2147483647, %v1691
    %v1694 = vcvt.s32.f32 %v1687
    %v1695 = vmul.f32 %v1694, %v1692
    %v1696 = vxor.u32 %v1695, 2147483648
    %v1697 = vsel %vm1614, %v1696, %v1695
    %v1698 = vsub.s32 4, %v1674
    %v1699 = vsel %vm1614, %v1698, %v1674
    %v1700 = vsel %vm1613, %v258, %v1697
    %v1701 = vsel %vm1613, 0, %v1699
    %v1702 = vcosq.f32.pop %v1700
    %v1703 = vsinq.f32.pop %v1700
    %vm1704 = vweird.f32 %v258
    %v1705 = vand.u32 %v1701, 3
    %vm1706 = vcmp.lt.s32.totalorder %v1705, 2
    %vm1707 = vcmp.eq.s32.totalorder %v1705, 0
    %v1708 = vxor.u32 %v1703, 2147483648
    %v1709 = vsel %vm1707, %v1702, %v1708
    %vm1710 = vcmp.eq.s32.totalorder %v1705, 2
    %v1711 = vxor.u32 %v1702, 2147483648
    %v1712 = vsel %vm1710, %v1711, %v1703
    %v1713 = vsel %vm1706, %v1709, %v1712
    %v1714 = vsel %vm1704, nan, %v1713
    %v1715 = vand.u32 2147483647, %v263
    %vm1716 = vcmp.le.f32.partialorder %v1715, 0.7853982
    %vm1717 = vcmp.lt.s32.totalorder %v263, 0
    %v1718 = vand.u32 %v263, 2139095040
    %v1719 = vshrl.u32 %v1718, 23
    %v1720 = vsub.s32 %v1719, 127
    %v1721 = vand.u32 2147483647, %v263
    %v1722 = vand.u32 %v1721, 8388607
    %v1723 = vor.u32 %v1722, 8388608
    %v1724 = vsub.s32 0, %v1723
    %v1725 = vadd.s32 %v1720, 1
    %vm1726 = vcmp.gt.s32.totalorder %v1725, 0
    %v1727 = vsel %vm1726, %v1725, 0
    %v1728 = vshrl.u32 %v1727, 5
    %v1729 = vand.u32 %v1727, 31
    %v1730 = vsub.s32 32, %v1729
    %v1731 = vshrl.u32 683565275, %v1730
    %v1732 = vshll.u32 683565275, %v1729
    %v1733 = vshrl.u32 2475754826, %v1730
    %v1734 = vor.u32 %v1732, %v1733
    %v1735 = vshll.u32 2475754826, %v1729
    %v1736 = vshrl.u32 2131351028, %v1730
    %v1737 = vor.u32 %v1735, %v1736
    %v1738 = vshll.u32 2131351028, %v1729
    %v1739 = vshrl.u32 2102212464, %v1730
    %v1740 = vor.u32 %v1738, %v1739
    %v1741 = vshll.u32 2102212464, %v1729
    %v1742 = vshrl.u32 920167782, %v1730
    %v1743 = vor.u32 %v1741, %v1742
    %v1744 = vshll.u32 920167782, %v1729
    %v1745 = vshrl.u32 1326507024, %v1730
    %v1746 = vor.u32 %v1744, %v1745
    %vm1747 = vcmp.lt.s32.totalorder %v1728, 1
    %vm1748 = vcmp.lt.s32.totalorder %v1728, 2
    %vm1749 = vcmp.lt.s32.totalorder %v1728, 3
    %vm1750 = vcmp.lt.s32.totalorder %v1728, 4
    %v1751 = vsel %vm1747, %v1731, %v1734
    %v1752 = vsel %vm1750, %v1740, 2102212464
    %v1753 = vsel %vm1749, %v1737, %v1752
    %v1754 = vsel %vm1748, %v1751, %v1753
    %v1755 = vsel %vm1747, %v1734, %v1737
    %v1756 = vsel %vm1750, %v1743, 920167782
    %v1757 = vsel %vm1749, %v1740, %v1756
    %v1758 = vsel %vm1748, %v1755, %v1757
    %v1759 = vsel %vm1747, %v1737, %v1740
    %v1760 = vsel %vm1750, %v1746, 1326507024
    %v1761 = vsel %vm1749, %v1743, %v1760
    %v1762 = vsel %vm1748, %v1759, %v1761
    %v1763 = vshll.u32 %v1723, 8
    %v1764 = vmul.u32.u64.compose %v1763, %v1762
    %v1765 = vextract.low.u32 %v1764
    %v1766 = vextract.high.u32 %v1764
    %v1767 = vmul.u32.u64.compose %v1763, %v1758
    %v1768 = vextract.low.u32 %v1767
    %v1769 = vextract.high.u32 %v1767
    %v1770 = vmul.u32 %v1763, %v1754
    %v1771 = vadd.s32 %v1766, %v1768
    %vm1772 = vc.u32 %v1766, %v1768
    %v1773 = vadd.s32 %v1769, 1
    %v1774 = vsel %vm1772, %v1773, %v1769
    %v1775 = vadd.s32 %v1770, %v1774
    %v1776 = vadd.s32 %v1775, 536870912
    %v1777 = vshrl.u32 %v1776, 30
    %v1778 = vshll.u32 %v1777, 30
    %v1779 = vsub.s32 %v1775, %v1778
    %vm1780 = vcmp.lt.s32.totalorder %v1779, 0
    %v1781 = vsub.s32 0, %v1779
    %v1782 = vsel %vm1780, %v1781, %v1779
    %v1783 = vclz %v1782
    %v1784 = vsub.s32 %v1783, 2
    %vm1785 = vcmp.gt.s32.totalorder 0, %v1784
    %v1786 = vsel %vm1785, 0, %v1784
    %v1787 = vsub.s32 32, %v1786
    %v1788 = vshll.u32 %v1779, %v1786
    %v1789 = vshrl.u32 %v1771, %v1787
    %v1790 = vor.u32 %v1788, %v1789
    %v1791 = vsub.s32 4294967266, %v1786
    %v1792 = vadd.s32 %v1791, 127
    %v1793 = vshll.u32 %v1792, 23
    %v1794 = vor.u32 4788187, %v1793
    %v1795 = vand.u32 2147483647, %v1794
    %v1797 = vcvt.s32.f32 %v1790
    %v1798 = vmul.f32 %v1797, %v1795
    %v1799 = vxor.u32 %v1798, 2147483648
    %v1800 = vsel %vm1717, %v1799, %v1798
    %v1801 = vsub.s32 4, %v1777
    %v1802 = vsel %vm1717, %v1801, %v1777
    %v1803 = vsel %vm1716, %v263, %v1800
    %v1804 = vsel %vm1716, 0, %v1802
    %v1805 = vcosq.f32.pop %v1803
    %v1806 = vsinq.f32.pop %v1803
    %vm1807 = vweird.f32 %v263
    %v1808 = vand.u32 %v1804, 3
    %vm1809 = vcmp.lt.s32.totalorder %v1808, 2
    %vm1810 = vcmp.eq.s32.totalorder %v1808, 0
    %v1811 = vxor.u32 %v1806, 2147483648
    %v1812 = vsel %vm1810, %v1805, %v1811
    %vm1813 = vcmp.eq.s32.totalorder %v1808, 2
    %v1814 = vxor.u32 %v1805, 2147483648
    %v1815 = vsel %vm1813, %v1814, %v1806
    %v1816 = vsel %vm1809, %v1812, %v1815
    %v1817 = vsel %vm1807, nan, %v1816
    %v1818 = vand.u32 2147483647, %v268
    %vm1819 = vcmp.le.f32.partialorder %v1818, 0.7853982
    %vm1820 = vcmp.lt.s32.totalorder %v268, 0
    %v1821 = vand.u32 %v268, 2139095040
    %v1822 = vshrl.u32 %v1821, 23
    %v1823 = vsub.s32 %v1822, 127
    %v1824 = vand.u32 2147483647, %v268
    %v1825 = vand.u32 %v1824, 8388607
    %v1826 = vor.u32 %v1825, 8388608
    %v1827 = vsub.s32 0, %v1826
    %v1828 = vadd.s32 %v1823, 1
    %vm1829 = vcmp.gt.s32.totalorder %v1828, 0
    %v1830 = vsel %vm1829, %v1828, 0
    %v1831 = vshrl.u32 %v1830, 5
    %v1832 = vand.u32 %v1830, 31
    %v1833 = vsub.s32 32, %v1832
    %v1834 = vshrl.u32 683565275, %v1833
    %v1835 = vshll.u32 683565275, %v1832
    %v1836 = vshrl.u32 2475754826, %v1833
    %v1837 = vor.u32 %v1835, %v1836
    %v1838 = vshll.u32 2475754826, %v1832
    %v1839 = vshrl.u32 2131351028, %v1833
    %v1840 = vor.u32 %v1838, %v1839
    %v1841 = vshll.u32 2131351028, %v1832
    %v1842 = vshrl.u32 2102212464, %v1833
    %v1843 = vor.u32 %v1841, %v1842
    %v1844 = vshll.u32 2102212464, %v1832
    %v1845 = vshrl.u32 920167782, %v1833
    %v1846 = vor.u32 %v1844, %v1845
    %v1847 = vshll.u32 920167782, %v1832
    %v1848 = vshrl.u32 1326507024, %v1833
    %v1849 = vor.u32 %v1847, %v1848
    %vm1850 = vcmp.lt.s32.totalorder %v1831, 1
    %vm1851 = vcmp.lt.s32.totalorder %v1831, 2
    %vm1852 = vcmp.lt.s32.totalorder %v1831, 3
    %vm1853 = vcmp.lt.s32.totalorder %v1831, 4
    %v1854 = vsel %vm1850, %v1834, %v1837
    %v1855 = vsel %vm1853, %v1843, 2102212464
    %v1856 = vsel %vm1852, %v1840, %v1855
    %v1857 = vsel %vm1851, %v1854, %v1856
    %v1858 = vsel %vm1850, %v1837, %v1840
    %v1859 = vsel %vm1853, %v1846, 920167782
    %v1860 = vsel %vm1852, %v1843, %v1859
    %v1861 = vsel %vm1851, %v1858, %v1860
    %v1862 = vsel %vm1850, %v1840, %v1843
    %v1863 = vsel %vm1853, %v1849, 1326507024
    %v1864 = vsel %vm1852, %v1846, %v1863
    %v1865 = vsel %vm1851, %v1862, %v1864
    %v1866 = vshll.u32 %v1826, 8
    %v1867 = vmul.u32.u64.compose %v1866, %v1865
    %v1868 = vextract.low.u32 %v1867
    %v1869 = vextract.high.u32 %v1867
    %v1870 = vmul.u32.u64.compose %v1866, %v1861
    %v1871 = vextract.low.u32 %v1870
    %v1872 = vextract.high.u32 %v1870
    %v1873 = vmul.u32 %v1866, %v1857
    %v1874 = vadd.s32 %v1869, %v1871
    %vm1875 = vc.u32 %v1869, %v1871
    %v1876 = vadd.s32 %v1872, 1
    %v1877 = vsel %vm1875, %v1876, %v1872
    %v1878 = vadd.s32 %v1873, %v1877
    %v1879 = vadd.s32 %v1878, 536870912
    %v1880 = vshrl.u32 %v1879, 30
    %v1881 = vshll.u32 %v1880, 30
    %v1882 = vsub.s32 %v1878, %v1881
    %vm1883 = vcmp.lt.s32.totalorder %v1882, 0
    %v1884 = vsub.s32 0, %v1882
    %v1885 = vsel %vm1883, %v1884, %v1882
    %v1886 = vclz %v1885
    %v1887 = vsub.s32 %v1886, 2
    %vm1888 = vcmp.gt.s32.totalorder 0, %v1887
    %v1889 = vsel %vm1888, 0, %v1887
    %v1890 = vsub.s32 32, %v1889
    %v1891 = vshll.u32 %v1882, %v1889
    %v1892 = vshrl.u32 %v1874, %v1890
    %v1893 = vor.u32 %v1891, %v1892
    %v1894 = vsub.s32 4294967266, %v1889
    %v1895 = vadd.s32 %v1894, 127
    %v1896 = vshll.u32 %v1895, 23
    %v1897 = vor.u32 4788187, %v1896
    %v1898 = vand.u32 2147483647, %v1897
    %v1900 = vcvt.s32.f32 %v1893
    %v1901 = vmul.f32 %v1900, %v1898
    %v1902 = vxor.u32 %v1901, 2147483648
    %v1903 = vsel %vm1820, %v1902, %v1901
    %v1904 = vsub.s32 4, %v1880
    %v1905 = vsel %vm1820, %v1904, %v1880
    %v1906 = vsel %vm1819, %v268, %v1903
    %v1907 = vsel %vm1819, 0, %v1905
    %v1908 = vcosq.f32.pop %v1906
    %v1909 = vsinq.f32.pop %v1906
    %vm1910 = vweird.f32 %v268
    %v1911 = vand.u32 %v1907, 3
    %vm1912 = vcmp.lt.s32.totalorder %v1911, 2
    %vm1913 = vcmp.eq.s32.totalorder %v1911, 0
    %v1914 = vxor.u32 %v1909, 2147483648
    %v1915 = vsel %vm1913, %v1908, %v1914
    %vm1916 = vcmp.eq.s32.totalorder %v1911, 2
    %v1917 = vxor.u32 %v1908, 2147483648
    %v1918 = vsel %vm1916, %v1917, %v1909
    %v1919 = vsel %vm1912, %v1915, %v1918
    %v1920 = vsel %vm1910, nan, %v1919
    %v1921 = vsel %vm272, 1, 0
    %v1922 = vlaneseq
    %v1923 = vshrl.u32 %v1922, 7
    %v1924 = vsub.s32 0, %v1923
    %v1925 = vrot.slane %v1921, %v1924
    %vm1926 = vcmp.eq.s32.totalorder %v1925, 1
    %v1927 = vsel %vm1926, %v375, %v193
    %v1928 = vsel %vm1926, %v478, %v198
    %v1929 = vsel %vm1926, %v581, %v203
    %v1930 = vsel %vm1926, %v684, %v208
    %v1931 = vsel %vm1926, %v787, %v213
    %v1932 = vsel %vm1926, %v890, %v218
    %v1933 = vsel %vm1926, %v993, %v223
    %v1934 = vsel %vm1926, %v1096, %v228
    %v1935 = vsel %vm1926, %v1199, %v233
    %v1936 = vsel %vm1926, %v1302, %v238
    %v1937 = vsel %vm1926, %v1405, %v243
    %v1938 = vsel %vm1926, %v1508, %v248
    %v1939 = vsel %vm1926, %v1611, %v253
    %v1940 = vsel %vm1926, %v1714, %v258
    %v1941 = vsel %vm1926, %v1817, %v263
    %v1942 = vsel %vm1926, %v1920, %v268
    %v1943 = vpack.c.bf16 %v1928, %v1927
    %v1944 = vpack.c.bf16 %v1930, %v1929
    %v1945 = vpack.c.bf16 %v1932, %v1931
    %v1946 = vpack.c.bf16 %v1934, %v1933
    %v1947 = vpack.c.bf16 %v1936, %v1935
    %v1948 = vpack.c.bf16 %v1938, %v1937
    %v1949 = vpack.c.bf16 %v1940, %v1939
    %v1950 = vpack.c.bf16 %v1942, %v1941
    %v1959 = vunpack.c.l.b16 %v1943
    %v1960 = vunpack.c.h.b16 %v1943
    %v1961 = vunpack.c.l.b16 %v1944
    %v1962 = vunpack.c.h.b16 %v1944
    %v1963 = vunpack.c.l.b16 %v1945
    %v1964 = vunpack.c.h.b16 %v1945
    %v1965 = vunpack.c.l.b16 %v1946
    %v1966 = vunpack.c.h.b16 %v1946
    %v1967 = vunpack.c.l.b16 %v1947
    %v1968 = vunpack.c.h.b16 %v1947
    %v1969 = vunpack.c.l.b16 %v1948
    %v1970 = vunpack.c.h.b16 %v1948
    %v1971 = vunpack.c.l.b16 %v1949
    %v1972 = vunpack.c.h.b16 %v1949
    %v1973 = vunpack.c.l.b16 %v1950
    %v1974 = vunpack.c.h.b16 %v1950
    %v1975 = vpack.c.b16 %v1959, %v1959
    %v1976 = vpack.c.b16 %v1960, %v1960
    %v1977 = vpack.c.b16 %v1961, %v1961
    %v1978 = vpack.c.b16 %v1962, %v1962
    %v1979 = vpack.c.b16 %v1963, %v1963
    %v1980 = vpack.c.b16 %v1964, %v1964
    %v1981 = vpack.c.b16 %v1965, %v1965
    %v1982 = vpack.c.b16 %v1966, %v1966
    %v1983 = vpack.c.b16 %v1967, %v1967
    %v1984 = vpack.c.b16 %v1968, %v1968
    %v1985 = vpack.c.b16 %v1969, %v1969
    %v1986 = vpack.c.b16 %v1970, %v1970
    %v1987 = vpack.c.b16 %v1971, %v1971
    %v1988 = vpack.c.b16 %v1972, %v1972
    %v1989 = vpack.c.b16 %v1973, %v1973
    %v1990 = vpack.c.b16 %v1974, %v1974
    %2007 = vst [vmem:[#allocation7] sm:$0xf] %v1975
    %2008 = vst [vmem:[#allocation7 + $0x4] sm:$0xf] %v1976
    %2009 = vst [vmem:[#allocation7 + $0x8] sm:$0xf] %v1977
    %2010 = vst [vmem:[#allocation7 + $0xc] sm:$0xf] %v1978
    %2011 = vst [vmem:[#allocation7 + $0x10] sm:$0xf] %v1979
    %2012 = vst [vmem:[#allocation7 + $0x14] sm:$0xf] %v1980
    %2013 = vst [vmem:[#allocation7 + $0x18] sm:$0xf] %v1981
    %2014 = vst [vmem:[#allocation7 + $0x1c] sm:$0xf] %v1982
    %2015 = vst [vmem:[#allocation7 + $0x20] sm:$0xf] %v1983
    %2016 = vst [vmem:[#allocation7 + $0x24] sm:$0xf] %v1984
    %2017 = vst [vmem:[#allocation7 + $0x28] sm:$0xf] %v1985
    %2018 = vst [vmem:[#allocation7 + $0x2c] sm:$0xf] %v1986
    %2019 = vst [vmem:[#allocation7 + $0x30] sm:$0xf] %v1987
    %2020 = vst [vmem:[#allocation7 + $0x34] sm:$0xf] %v1988
    %2021 = vst [vmem:[#allocation7 + $0x38] sm:$0xf] %v1989
    %2022 = vst [vmem:[#allocation7 + $0x3c] sm:$0xf] %v1990
    // Predicated region
    $region22: #{tpu_custom_call.1} parent=1 // pred_check
      _
    $region23: #{tpu_custom_call.1} parent=1 // pred_check_branch
      %2024 = sbr.rel (0) target = $region25
    $region24: #{tpu_custom_call.1} parent=1 // pred_region
      %s2026 = ssub.s32 1024, 1024
      %2027 = vsyncadd [#allocation4], %s2026
      %s2028 = sshll.u32 [#allocation7], 4
      %s2029 = int_to_ptr.vmem [resolvable:$true] %s2028
      %2034 = dma.vmem_to_hbm [thread:$0]  %s2029, 1024, %s3, [#allocation4], 64, 64, 4
    $region25: #{tpu_custom_call.1} parent=1 // pred_fallthru
      _
    // Predicated region
    $region26: #{tpu_custom_call.1} parent=1 // pred_check
      _
    $region27: #{tpu_custom_call.1} parent=1 // pred_check_branch
      %2036 = sbr.rel (0) target = $region29
    $region28: #{tpu_custom_call.1} parent=1 // pred_region
      %2037 = dma.done [#allocation4], 1024
    $region29: #{tpu_custom_call.1} parent=1 // pred_fallthru
      _
    %2038 = vsyncpa [#allocation3], 1
    %2039 = vsyncpa [#allocation6], 1
    %2040 = vsyncpa [#allocation4], 1

</llo_original>
